<compile_context>
chip_gen: v6e
topology: v6e:2x2x1
jax: 0.10.0
libtpu: 0.0.40
codegen_flags: <defaults>
</compile_context>

<pallas_src>
import functools

import jax
import jax.numpy as jnp
import numpy as np
from jax.experimental import pallas as pl
from jax.experimental.pallas import tpu as pltpu


def _rnn_kernel(seq, batch, num_layer, hidden,
                x_ref, wih0_ref, wihr_ref, whh_ref, b_ref, wlin_ref, blin_ref,
                out_ref, htop_ref):
    # ---- hoist all weight/bias loads out of the time loop -------------------
    wih0 = wih0_ref[...]                                     # (input_dim, H) == W_ih[0].T
    whh = [whh_ref[l] for l in range(num_layer)]             # each (H, H) == W_hh[l].T
    wihr = [wihr_ref[l] for l in range(num_layer - 1)]       # each (H, H) == W_ih[l].T, l>=1
    bias = [b_ref[pl.ds(l, 1), :] for l in range(num_layer)] # each (1, H) == b_ih[l]+b_hh[l]

    # ---- layer-0 input projection for ALL timesteps in one matmul -----------
    # (seq*batch, input_dim) @ (input_dim, H) + b0  -> (seq*batch, H)
    x0 = jnp.dot(x_ref[...], wih0, preferred_element_type=jnp.float32) + bias[0]

    # ---- recurrence: hidden state carried as values across the unrolled loop.
    # PyTorch default h0 = 0.
    h = [jnp.zeros((batch, hidden), jnp.float32) for _ in range(num_layer)]

    for t in range(seq):
        cur = jnp.tanh(x0[t * batch:(t + 1) * batch, :]
                       + jnp.dot(h[0], whh[0], preferred_element_type=jnp.float32))
        h[0] = cur
        for l in range(1, num_layer):
            pre = (jnp.dot(cur, wihr[l - 1], preferred_element_type=jnp.float32)
                   + jnp.dot(h[l], whh[l], preferred_element_type=jnp.float32)
                   + bias[l])
            cur = jnp.tanh(pre)
            h[l] = cur
        htop_ref[t] = cur   # stash top-layer hidden state; final linear is batched below

    # ---- final Linear(hidden, 1) over all timesteps, single output store ----
    # out[t, b] = sum_h htop[t, b, h] * W_lin[0, h] + b_lin
    wl = wlin_ref[...].reshape(1, 1, hidden)                       # (1, 1, H)
    out = jnp.sum(htop_ref[...] * wl, axis=-1) + blin_ref[...]     # (seq, batch)
    out_ref[...] = out.astype(out_ref.dtype)


def basic_rnn_forward(x, params):
    """x: (seq, batch, input_dim) f32, params in PyTorch layout -> (seq*batch,) f32."""
    w_ih, w_hh, b_ih, b_hh, w_lin, b_lin = params
    seq, batch, input_dim = x.shape
    num_layer, hidden, _ = w_hh.shape

    # One-time packing outside the kernel (transposes / bias pre-add).
    wih0_T = jnp.transpose(w_ih[0])                              # (input_dim, H)
    if num_layer > 1:
        wihr_T = jnp.stack([jnp.transpose(w_ih[l]) for l in range(1, num_layer)])
    else:
        wihr_T = jnp.zeros((1, hidden, hidden), jnp.float32)     # dummy, never read
    whh_T = jnp.transpose(w_hh, (0, 2, 1))                       # (L, H, H)
    bias = (b_ih + b_hh).astype(jnp.float32)                     # (L, H)
    wlin = w_lin.reshape(1, hidden).astype(jnp.float32)          # (1, H)
    blin = b_lin.reshape(1, 1).astype(jnp.float32)               # (1, 1)
    x2d = x.reshape(seq * batch, input_dim)                      # seq-major flatten

    out = pl.pallas_call(
        functools.partial(_rnn_kernel, seq, batch, num_layer, hidden),
        out_shape=jax.ShapeDtypeStruct((seq, batch), jnp.float32),
        grid_spec=pltpu.PrefetchScalarGridSpec(
            num_scalar_prefetch=0,
            grid=(1,),  # single invocation: whole problem fits easily in VMEM
            in_specs=[
                pl.BlockSpec((seq * batch, input_dim), lambda i: (0, 0)),   # x (flat)
                pl.BlockSpec((input_dim, hidden), lambda i: (0, 0)),        # W_ih[0].T
                pl.BlockSpec(wihr_T.shape, lambda i: (0, 0, 0)),            # W_ih[1:].T
                pl.BlockSpec((num_layer, hidden, hidden), lambda i: (0, 0, 0)),  # W_hh.T
                pl.BlockSpec((num_layer, hidden), lambda i: (0, 0)),        # b_ih + b_hh
                pl.BlockSpec((1, hidden), lambda i: (0, 0)),                # W_lin
                pl.BlockSpec((1, 1), lambda i: (0, 0)),                     # b_lin
            ],
            out_specs=pl.BlockSpec((seq, batch), lambda i: (0, 0)),
            scratch_shapes=[pltpu.VMEM((seq, batch, hidden), jnp.float32)],  # top-layer h
        ),
        compiler_params=pltpu.CompilerParams(
            dimension_semantics=("arbitrary",)),
    )(x2d, wih0_T, wihr_T, whh_T, bias, wlin, blin)
    return out.reshape(-1)


def basic_rnn_ref(x, params):
    """Pure-JAX reference of the same forward pass (PyTorch semantics)."""
    w_ih, w_hh, b_ih, b_hh, w_lin, b_lin = params
    num_layer, hidden, _ = w_hh.shape
    seq, batch, _ = x.shape
    h = jnp.zeros((num_layer, batch, hidden), jnp.float32)
    outs = []
    for t in range(seq):
        cur = x[t]
        new_h = []
        for l in range(num_layer):
            hl = jnp.tanh(cur @ w_ih[l].T + h[l] @ w_hh[l].T + b_ih[l] + b_hh[l])
            new_h.append(hl)
            cur = hl
        h = jnp.stack(new_h)
        outs.append(cur @ w_lin.T + b_lin)          # (batch, 1)
    return jnp.stack(outs).reshape(-1)              # (seq, batch, 1) -> (seq*batch,)


if __name__ == "__main__":
    seq, batch, input_dim, hidden, num_layer = 8, 8, 16, 32, 2

    key = jax.random.PRNGKey(0)
    keys = jax.random.split(key, num_layer + 6)
    k = 1.0 / np.sqrt(hidden)  # PyTorch-style uniform(-1/sqrt(H), 1/sqrt(H)) init

    # Parameters in PyTorch layout (weight_ih_l0: (H, in), weight_ih_l{l>=1}: (H, H), ...).
    w_ih = tuple(
        jax.random.uniform(keys[l], (hidden, input_dim if l == 0 else hidden),
                           jnp.float32, -k, k)
        for l in range(num_layer))
    w_hh = jax.random.uniform(keys[num_layer + 0], (num_layer, hidden, hidden),
                              jnp.float32, -k, k)
    b_ih = jax.random.uniform(keys[num_layer + 1], (num_layer, hidden), jnp.float32, -k, k)
    b_hh = jax.random.uniform(keys[num_layer + 2], (num_layer, hidden), jnp.float32, -k, k)
    w_lin = jax.random.uniform(keys[num_layer + 3], (1, hidden), jnp.float32, -k, k)
    b_lin = jax.random.uniform(keys[num_layer + 4], (1,), jnp.float32, -k, k)
    x = jax.random.normal(keys[num_layer + 5], (seq, batch, input_dim), jnp.float32)

    params = (w_ih, w_hh, b_ih, b_hh, w_lin, b_lin)

    out = basic_rnn_forward(x, params)
    jax.block_until_ready(out)

    ref = basic_rnn_ref(x, params)
    np.testing.assert_allclose(np.asarray(out), np.asarray(ref), rtol=2e-2, atol=2e-2)
    assert out.shape == (seq * batch,)
    print("KERNEL_OK")
</pallas_src>

<mosaic_0001>
module attributes {stable_mosaic.version = 11 : i64} {
  func.func @_rnn_kernel(%arg0: i32, %arg1: memref<64x16xf32, #tpu.memory_space<vmem>>, %arg2: memref<16x32xf32, #tpu.memory_space<vmem>>, %arg3: memref<1x32x32xf32, #tpu.memory_space<vmem>>, %arg4: memref<2x32x32xf32, #tpu.memory_space<vmem>>, %arg5: memref<2x32xf32, #tpu.memory_space<vmem>>, %arg6: memref<1x32xf32, #tpu.memory_space<vmem>>, %arg7: memref<1x1xf32, #tpu.memory_space<vmem>>, %arg8: memref<8x8xf32, #tpu.memory_space<vmem>>, %arg9: memref<8x8x32xf32, #tpu.memory_space<vmem>>) attributes {dimension_semantics = [#tpu.dimension_semantics<arbitrary>], iteration_bounds = array<i64: 1>, scalar_prefetch = 0 : i64, scratch_operands = 1 : i64, tpu.core_type = #tpu.core_type<tc>, window_params = [{pipeline_mode = #tpu.pipeline_mode<synchronous>, transform_indices = @transform_0, window_bounds = array<i64: 64, 16>}, {pipeline_mode = #tpu.pipeline_mode<synchronous>, transform_indices = @transform_1, window_bounds = array<i64: 16, 32>}, {pipeline_mode = #tpu.pipeline_mode<synchronous>, transform_indices = @transform_2, window_bounds = array<i64: 1, 32, 32>}, {pipeline_mode = #tpu.pipeline_mode<synchronous>, transform_indices = @transform_3, window_bounds = array<i64: 2, 32, 32>}, {pipeline_mode = #tpu.pipeline_mode<synchronous>, transform_indices = @transform_4, window_bounds = array<i64: 2, 32>}, {pipeline_mode = #tpu.pipeline_mode<synchronous>, transform_indices = @transform_5, window_bounds = array<i64: 1, 32>}, {pipeline_mode = #tpu.pipeline_mode<synchronous>, transform_indices = @transform_6, window_bounds = array<i64: 1, 1>}, {pipeline_mode = #tpu.pipeline_mode<synchronous>, transform_indices = @transform_7, window_bounds = array<i64: 8, 8>}]} {
    %c0 = arith.constant 0 : index
    %c0_0 = arith.constant 0 : index
    %0 = vector.load %arg2[%c0, %c0_0] : memref<16x32xf32, #tpu.memory_space<vmem>>, vector<16x32xf32>
    %c0_1 = arith.constant 0 : index
    %c0_2 = arith.constant 0 : index
    %c0_3 = arith.constant 0 : index
    %1 = vector.load %arg4[%c0_1, %c0_2, %c0_3] : memref<2x32x32xf32, #tpu.memory_space<vmem>>, vector<1x32x32xf32>
    %2 = vector.shape_cast %1 : vector<1x32x32xf32> to vector<32x32xf32>
    %c1 = arith.constant 1 : index
    %c0_4 = arith.constant 0 : index
    %c0_5 = arith.constant 0 : index
    %3 = vector.load %arg4[%c1, %c0_4, %c0_5] : memref<2x32x32xf32, #tpu.memory_space<vmem>>, vector<1x32x32xf32>
    %4 = vector.shape_cast %3 : vector<1x32x32xf32> to vector<32x32xf32>
    %c0_6 = arith.constant 0 : index
    %c0_7 = arith.constant 0 : index
    %c0_8 = arith.constant 0 : index
    %5 = vector.load %arg3[%c0_6, %c0_7, %c0_8] : memref<1x32x32xf32, #tpu.memory_space<vmem>>, vector<1x32x32xf32>
    %6 = vector.shape_cast %5 : vector<1x32x32xf32> to vector<32x32xf32>
    %c0_9 = arith.constant 0 : index
    %c0_10 = arith.constant 0 : index
    %7 = vector.load %arg5[%c0_9, %c0_10] : memref<2x32xf32, #tpu.memory_space<vmem>>, vector<1x32xf32>
    %c1_11 = arith.constant 1 : index
    %c0_12 = arith.constant 0 : index
    %8 = vector.load %arg5[%c1_11, %c0_12] : memref<2x32xf32, #tpu.memory_space<vmem>>, vector<1x32xf32>
    %c0_13 = arith.constant 0 : index
    %c0_14 = arith.constant 0 : index
    %9 = vector.load %arg1[%c0_13, %c0_14] : memref<64x16xf32, #tpu.memory_space<vmem>>, vector<64x16xf32>
    %cst = arith.constant dense<0.000000e+00> : vector<64x32xf32>
    %10 = tpu.matmul %9, %0, %cst {dimension_numbers = #tpu.dot_dimension_numbers<[1], [0], [0], [1], [0, 0, 1, 1], [], []>} : vector<64x16xf32>, vector<16x32xf32>, vector<64x32xf32> -> vector<64x32xf32>
    %11 = vector.broadcast %7 : vector<1x32xf32> to vector<64x32xf32>
    %12 = arith.addf %10, %11 : vector<64x32xf32>
    %cst_15 = arith.constant 0.000000e+00 : f32
    %13 = vector.broadcast %cst_15 : f32 to vector<8x32xf32>
    %cst_16 = arith.constant 0.000000e+00 : f32
    %14 = vector.broadcast %cst_16 : f32 to vector<8x32xf32>
    %15 = vector.extract_strided_slice %12 {offsets = [0, 0], sizes = [8, 32], strides = [1, 1]} : vector<64x32xf32> to vector<8x32xf32>
    %cst_17 = arith.constant dense<0.000000e+00> : vector<8x32xf32>
    %16 = tpu.matmul %13, %2, %cst_17 {dimension_numbers = #tpu.dot_dimension_numbers<[1], [0], [0], [1], [0, 0, 1, 1], [], []>} : vector<8x32xf32>, vector<32x32xf32>, vector<8x32xf32> -> vector<8x32xf32>
    %17 = arith.addf %15, %16 : vector<8x32xf32>
    %18 = math.tanh %17 : vector<8x32xf32>
    %cst_18 = arith.constant dense<0.000000e+00> : vector<8x32xf32>
    %19 = tpu.matmul %18, %6, %cst_18 {dimension_numbers = #tpu.dot_dimension_numbers<[1], [0], [0], [1], [0, 0, 1, 1], [], []>} : vector<8x32xf32>, vector<32x32xf32>, vector<8x32xf32> -> vector<8x32xf32>
    %cst_19 = arith.constant dense<0.000000e+00> : vector<8x32xf32>
    %20 = tpu.matmul %14, %4, %cst_19 {dimension_numbers = #tpu.dot_dimension_numbers<[1], [0], [0], [1], [0, 0, 1, 1], [], []>} : vector<8x32xf32>, vector<32x32xf32>, vector<8x32xf32> -> vector<8x32xf32>
    %21 = arith.addf %19, %20 : vector<8x32xf32>
    %22 = vector.broadcast %8 : vector<1x32xf32> to vector<8x32xf32>
    %23 = arith.addf %21, %22 : vector<8x32xf32>
    %24 = math.tanh %23 : vector<8x32xf32>
    %c0_20 = arith.constant 0 : index
    %c0_21 = arith.constant 0 : index
    %c0_22 = arith.constant 0 : index
    %25 = vector.load %arg9[%c0_20, %c0_21, %c0_22] : memref<8x8x32xf32, #tpu.memory_space<vmem>>, vector<1x8x32xf32>
    %26 = vector.shape_cast %25 : vector<1x8x32xf32> to vector<8x32xf32>
    %27 = vector.shape_cast %24 : vector<8x32xf32> to vector<1x8x32xf32>
    tpu.vector_store %arg9[%c0_20, %c0_21, %c0_22], %27 {strides = array<i32>} : memref<8x8x32xf32, #tpu.memory_space<vmem>>, vector<1x8x32xf32>,
    %28 = vector.extract_strided_slice %12 {offsets = [8, 0], sizes = [8, 32], strides = [1, 1]} : vector<64x32xf32> to vector<8x32xf32>
    %cst_23 = arith.constant dense<0.000000e+00> : vector<8x32xf32>
    %29 = tpu.matmul %18, %2, %cst_23 {dimension_numbers = #tpu.dot_dimension_numbers<[1], [0], [0], [1], [0, 0, 1, 1], [], []>} : vector<8x32xf32>, vector<32x32xf32>, vector<8x32xf32> -> vector<8x32xf32>
    %30 = arith.addf %28, %29 : vector<8x32xf32>
    %31 = math.tanh %30 : vector<8x32xf32>
    %cst_24 = arith.constant dense<0.000000e+00> : vector<8x32xf32>
    %32 = tpu.matmul %31, %6, %cst_24 {dimension_numbers = #tpu.dot_dimension_numbers<[1], [0], [0], [1], [0, 0, 1, 1], [], []>} : vector<8x32xf32>, vector<32x32xf32>, vector<8x32xf32> -> vector<8x32xf32>
    %cst_25 = arith.constant dense<0.000000e+00> : vector<8x32xf32>
    %33 = tpu.matmul %24, %4, %cst_25 {dimension_numbers = #tpu.dot_dimension_numbers<[1], [0], [0], [1], [0, 0, 1, 1], [], []>} : vector<8x32xf32>, vector<32x32xf32>, vector<8x32xf32> -> vector<8x32xf32>
    %34 = arith.addf %32, %33 : vector<8x32xf32>
    %35 = vector.broadcast %8 : vector<1x32xf32> to vector<8x32xf32>
    %36 = arith.addf %34, %35 : vector<8x32xf32>
    %37 = math.tanh %36 : vector<8x32xf32>
    %c1_26 = arith.constant 1 : index
    %c0_27 = arith.constant 0 : index
    %c0_28 = arith.constant 0 : index
    %38 = vector.load %arg9[%c1_26, %c0_27, %c0_28] : memref<8x8x32xf32, #tpu.memory_space<vmem>>, vector<1x8x32xf32>
    %39 = vector.shape_cast %38 : vector<1x8x32xf32> to vector<8x32xf32>
    %40 = vector.shape_cast %37 : vector<8x32xf32> to vector<1x8x32xf32>
    tpu.vector_store %arg9[%c1_26, %c0_27, %c0_28], %40 {strides = array<i32>} : memref<8x8x32xf32, #tpu.memory_space<vmem>>, vector<1x8x32xf32>,
    %41 = vector.extract_strided_slice %12 {offsets = [16, 0], sizes = [8, 32], strides = [1, 1]} : vector<64x32xf32> to vector<8x32xf32>
    %cst_29 = arith.constant dense<0.000000e+00> : vector<8x32xf32>
    %42 = tpu.matmul %31, %2, %cst_29 {dimension_numbers = #tpu.dot_dimension_numbers<[1], [0], [0], [1], [0, 0, 1, 1], [], []>} : vector<8x32xf32>, vector<32x32xf32>, vector<8x32xf32> -> vector<8x32xf32>
    %43 = arith.addf %41, %42 : vector<8x32xf32>
    %44 = math.tanh %43 : vector<8x32xf32>
    %cst_30 = arith.constant dense<0.000000e+00> : vector<8x32xf32>
    %45 = tpu.matmul %44, %6, %cst_30 {dimension_numbers = #tpu.dot_dimension_numbers<[1], [0], [0], [1], [0, 0, 1, 1], [], []>} : vector<8x32xf32>, vector<32x32xf32>, vector<8x32xf32> -> vector<8x32xf32>
    %cst_31 = arith.constant dense<0.000000e+00> : vector<8x32xf32>
    %46 = tpu.matmul %37, %4, %cst_31 {dimension_numbers = #tpu.dot_dimension_numbers<[1], [0], [0], [1], [0, 0, 1, 1], [], []>} : vector<8x32xf32>, vector<32x32xf32>, vector<8x32xf32> -> vector<8x32xf32>
    %47 = arith.addf %45, %46 : vector<8x32xf32>
    %48 = vector.broadcast %8 : vector<1x32xf32> to vector<8x32xf32>
    %49 = arith.addf %47, %48 : vector<8x32xf32>
    %50 = math.tanh %49 : vector<8x32xf32>
    %c2 = arith.constant 2 : index
    %c0_32 = arith.constant 0 : index
    %c0_33 = arith.constant 0 : index
    %51 = vector.load %arg9[%c2, %c0_32, %c0_33] : memref<8x8x32xf32, #tpu.memory_space<vmem>>, vector<1x8x32xf32>
    %52 = vector.shape_cast %51 : vector<1x8x32xf32> to vector<8x32xf32>
    %53 = vector.shape_cast %50 : vector<8x32xf32> to vector<1x8x32xf32>
    tpu.vector_store %arg9[%c2, %c0_32, %c0_33], %53 {strides = array<i32>} : memref<8x8x32xf32, #tpu.memory_space<vmem>>, vector<1x8x32xf32>,
    %54 = vector.extract_strided_slice %12 {offsets = [24, 0], sizes = [8, 32], strides = [1, 1]} : vector<64x32xf32> to vector<8x32xf32>
    %cst_34 = arith.constant dense<0.000000e+00> : vector<8x32xf32>
    %55 = tpu.matmul %44, %2, %cst_34 {dimension_numbers = #tpu.dot_dimension_numbers<[1], [0], [0], [1], [0, 0, 1, 1], [], []>} : vector<8x32xf32>, vector<32x32xf32>, vector<8x32xf32> -> vector<8x32xf32>
    %56 = arith.addf %54, %55 : vector<8x32xf32>
    %57 = math.tanh %56 : vector<8x32xf32>
    %cst_35 = arith.constant dense<0.000000e+00> : vector<8x32xf32>
    %58 = tpu.matmul %57, %6, %cst_35 {dimension_numbers = #tpu.dot_dimension_numbers<[1], [0], [0], [1], [0, 0, 1, 1], [], []>} : vector<8x32xf32>, vector<32x32xf32>, vector<8x32xf32> -> vector<8x32xf32>
    %cst_36 = arith.constant dense<0.000000e+00> : vector<8x32xf32>
    %59 = tpu.matmul %50, %4, %cst_36 {dimension_numbers = #tpu.dot_dimension_numbers<[1], [0], [0], [1], [0, 0, 1, 1], [], []>} : vector<8x32xf32>, vector<32x32xf32>, vector<8x32xf32> -> vector<8x32xf32>
    %60 = arith.addf %58, %59 : vector<8x32xf32>
    %61 = vector.broadcast %8 : vector<1x32xf32> to vector<8x32xf32>
    %62 = arith.addf %60, %61 : vector<8x32xf32>
    %63 = math.tanh %62 : vector<8x32xf32>
    %c3 = arith.constant 3 : index
    %c0_37 = arith.constant 0 : index
    %c0_38 = arith.constant 0 : index
    %64 = vector.load %arg9[%c3, %c0_37, %c0_38] : memref<8x8x32xf32, #tpu.memory_space<vmem>>, vector<1x8x32xf32>
    %65 = vector.shape_cast %64 : vector<1x8x32xf32> to vector<8x32xf32>
    %66 = vector.shape_cast %63 : vector<8x32xf32> to vector<1x8x32xf32>
    tpu.vector_store %arg9[%c3, %c0_37, %c0_38], %66 {strides = array<i32>} : memref<8x8x32xf32, #tpu.memory_space<vmem>>, vector<1x8x32xf32>,
    %67 = vector.extract_strided_slice %12 {offsets = [32, 0], sizes = [8, 32], strides = [1, 1]} : vector<64x32xf32> to vector<8x32xf32>
    %cst_39 = arith.constant dense<0.000000e+00> : vector<8x32xf32>
    %68 = tpu.matmul %57, %2, %cst_39 {dimension_numbers = #tpu.dot_dimension_numbers<[1], [0], [0], [1], [0, 0, 1, 1], [], []>} : vector<8x32xf32>, vector<32x32xf32>, vector<8x32xf32> -> vector<8x32xf32>
    %69 = arith.addf %67, %68 : vector<8x32xf32>
    %70 = math.tanh %69 : vector<8x32xf32>
    %cst_40 = arith.constant dense<0.000000e+00> : vector<8x32xf32>
    %71 = tpu.matmul %70, %6, %cst_40 {dimension_numbers = #tpu.dot_dimension_numbers<[1], [0], [0], [1], [0, 0, 1, 1], [], []>} : vector<8x32xf32>, vector<32x32xf32>, vector<8x32xf32> -> vector<8x32xf32>
    %cst_41 = arith.constant dense<0.000000e+00> : vector<8x32xf32>
    %72 = tpu.matmul %63, %4, %cst_41 {dimension_numbers = #tpu.dot_dimension_numbers<[1], [0], [0], [1], [0, 0, 1, 1], [], []>} : vector<8x32xf32>, vector<32x32xf32>, vector<8x32xf32> -> vector<8x32xf32>
    %73 = arith.addf %71, %72 : vector<8x32xf32>
    %74 = vector.broadcast %8 : vector<1x32xf32> to vector<8x32xf32>
    %75 = arith.addf %73, %74 : vector<8x32xf32>
    %76 = math.tanh %75 : vector<8x32xf32>
    %c4 = arith.constant 4 : index
    %c0_42 = arith.constant 0 : index
    %c0_43 = arith.constant 0 : index
    %77 = vector.load %arg9[%c4, %c0_42, %c0_43] : memref<8x8x32xf32, #tpu.memory_space<vmem>>, vector<1x8x32xf32>
    %78 = vector.shape_cast %77 : vector<1x8x32xf32> to vector<8x32xf32>
    %79 = vector.shape_cast %76 : vector<8x32xf32> to vector<1x8x32xf32>
    tpu.vector_store %arg9[%c4, %c0_42, %c0_43], %79 {strides = array<i32>} : memref<8x8x32xf32, #tpu.memory_space<vmem>>, vector<1x8x32xf32>,
    %80 = vector.extract_strided_slice %12 {offsets = [40, 0], sizes = [8, 32], strides = [1, 1]} : vector<64x32xf32> to vector<8x32xf32>
    %cst_44 = arith.constant dense<0.000000e+00> : vector<8x32xf32>
    %81 = tpu.matmul %70, %2, %cst_44 {dimension_numbers = #tpu.dot_dimension_numbers<[1], [0], [0], [1], [0, 0, 1, 1], [], []>} : vector<8x32xf32>, vector<32x32xf32>, vector<8x32xf32> -> vector<8x32xf32>
    %82 = arith.addf %80, %81 : vector<8x32xf32>
    %83 = math.tanh %82 : vector<8x32xf32>
    %cst_45 = arith.constant dense<0.000000e+00> : vector<8x32xf32>
    %84 = tpu.matmul %83, %6, %cst_45 {dimension_numbers = #tpu.dot_dimension_numbers<[1], [0], [0], [1], [0, 0, 1, 1], [], []>} : vector<8x32xf32>, vector<32x32xf32>, vector<8x32xf32> -> vector<8x32xf32>
    %cst_46 = arith.constant dense<0.000000e+00> : vector<8x32xf32>
    %85 = tpu.matmul %76, %4, %cst_46 {dimension_numbers = #tpu.dot_dimension_numbers<[1], [0], [0], [1], [0, 0, 1, 1], [], []>} : vector<8x32xf32>, vector<32x32xf32>, vector<8x32xf32> -> vector<8x32xf32>
    %86 = arith.addf %84, %85 : vector<8x32xf32>
    %87 = vector.broadcast %8 : vector<1x32xf32> to vector<8x32xf32>
    %88 = arith.addf %86, %87 : vector<8x32xf32>
    %89 = math.tanh %88 : vector<8x32xf32>
    %c5 = arith.constant 5 : index
    %c0_47 = arith.constant 0 : index
    %c0_48 = arith.constant 0 : index
    %90 = vector.load %arg9[%c5, %c0_47, %c0_48] : memref<8x8x32xf32, #tpu.memory_space<vmem>>, vector<1x8x32xf32>
    %91 = vector.shape_cast %90 : vector<1x8x32xf32> to vector<8x32xf32>
    %92 = vector.shape_cast %89 : vector<8x32xf32> to vector<1x8x32xf32>
    tpu.vector_store %arg9[%c5, %c0_47, %c0_48], %92 {strides = array<i32>} : memref<8x8x32xf32, #tpu.memory_space<vmem>>, vector<1x8x32xf32>,
    %93 = vector.extract_strided_slice %12 {offsets = [48, 0], sizes = [8, 32], strides = [1, 1]} : vector<64x32xf32> to vector<8x32xf32>
    %cst_49 = arith.constant dense<0.000000e+00> : vector<8x32xf32>
    %94 = tpu.matmul %83, %2, %cst_49 {dimension_numbers = #tpu.dot_dimension_numbers<[1], [0], [0], [1], [0, 0, 1, 1], [], []>} : vector<8x32xf32>, vector<32x32xf32>, vector<8x32xf32> -> vector<8x32xf32>
    %95 = arith.addf %93, %94 : vector<8x32xf32>
    %96 = math.tanh %95 : vector<8x32xf32>
    %cst_50 = arith.constant dense<0.000000e+00> : vector<8x32xf32>
    %97 = tpu.matmul %96, %6, %cst_50 {dimension_numbers = #tpu.dot_dimension_numbers<[1], [0], [0], [1], [0, 0, 1, 1], [], []>} : vector<8x32xf32>, vector<32x32xf32>, vector<8x32xf32> -> vector<8x32xf32>
    %cst_51 = arith.constant dense<0.000000e+00> : vector<8x32xf32>
    %98 = tpu.matmul %89, %4, %cst_51 {dimension_numbers = #tpu.dot_dimension_numbers<[1], [0], [0], [1], [0, 0, 1, 1], [], []>} : vector<8x32xf32>, vector<32x32xf32>, vector<8x32xf32> -> vector<8x32xf32>
    %99 = arith.addf %97, %98 : vector<8x32xf32>
    %100 = vector.broadcast %8 : vector<1x32xf32> to vector<8x32xf32>
    %101 = arith.addf %99, %100 : vector<8x32xf32>
    %102 = math.tanh %101 : vector<8x32xf32>
    %c6 = arith.constant 6 : index
    %c0_52 = arith.constant 0 : index
    %c0_53 = arith.constant 0 : index
    %103 = vector.load %arg9[%c6, %c0_52, %c0_53] : memref<8x8x32xf32, #tpu.memory_space<vmem>>, vector<1x8x32xf32>
    %104 = vector.shape_cast %103 : vector<1x8x32xf32> to vector<8x32xf32>
    %105 = vector.shape_cast %102 : vector<8x32xf32> to vector<1x8x32xf32>
    tpu.vector_store %arg9[%c6, %c0_52, %c0_53], %105 {strides = array<i32>} : memref<8x8x32xf32, #tpu.memory_space<vmem>>, vector<1x8x32xf32>,
    %106 = vector.extract_strided_slice %12 {offsets = [56, 0], sizes = [8, 32], strides = [1, 1]} : vector<64x32xf32> to vector<8x32xf32>
    %cst_54 = arith.constant dense<0.000000e+00> : vector<8x32xf32>
    %107 = tpu.matmul %96, %2, %cst_54 {dimension_numbers = #tpu.dot_dimension_numbers<[1], [0], [0], [1], [0, 0, 1, 1], [], []>} : vector<8x32xf32>, vector<32x32xf32>, vector<8x32xf32> -> vector<8x32xf32>
    %108 = arith.addf %106, %107 : vector<8x32xf32>
    %109 = math.tanh %108 : vector<8x32xf32>
    %cst_55 = arith.constant dense<0.000000e+00> : vector<8x32xf32>
    %110 = tpu.matmul %109, %6, %cst_55 {dimension_numbers = #tpu.dot_dimension_numbers<[1], [0], [0], [1], [0, 0, 1, 1], [], []>} : vector<8x32xf32>, vector<32x32xf32>, vector<8x32xf32> -> vector<8x32xf32>
    %cst_56 = arith.constant dense<0.000000e+00> : vector<8x32xf32>
    %111 = tpu.matmul %102, %4, %cst_56 {dimension_numbers = #tpu.dot_dimension_numbers<[1], [0], [0], [1], [0, 0, 1, 1], [], []>} : vector<8x32xf32>, vector<32x32xf32>, vector<8x32xf32> -> vector<8x32xf32>
    %112 = arith.addf %110, %111 : vector<8x32xf32>
    %113 = vector.broadcast %8 : vector<1x32xf32> to vector<8x32xf32>
    %114 = arith.addf %112, %113 : vector<8x32xf32>
    %115 = math.tanh %114 : vector<8x32xf32>
    %c7 = arith.constant 7 : index
    %c0_57 = arith.constant 0 : index
    %c0_58 = arith.constant 0 : index
    %116 = vector.load %arg9[%c7, %c0_57, %c0_58] : memref<8x8x32xf32, #tpu.memory_space<vmem>>, vector<1x8x32xf32>
    %117 = vector.shape_cast %116 : vector<1x8x32xf32> to vector<8x32xf32>
    %118 = vector.shape_cast %115 : vector<8x32xf32> to vector<1x8x32xf32>
    tpu.vector_store %arg9[%c7, %c0_57, %c0_58], %118 {strides = array<i32>} : memref<8x8x32xf32, #tpu.memory_space<vmem>>, vector<1x8x32xf32>,
    %c0_59 = arith.constant 0 : index
    %c0_60 = arith.constant 0 : index
    %119 = vector.load %arg6[%c0_59, %c0_60] : memref<1x32xf32, #tpu.memory_space<vmem>>, vector<1x32xf32>
    %120 = vector.shape_cast %119 : vector<1x32xf32> to vector<1x1x32xf32>
    %c0_61 = arith.constant 0 : index
    %c0_62 = arith.constant 0 : index
    %c0_63 = arith.constant 0 : index
    %121 = vector.load %arg9[%c0_61, %c0_62, %c0_63] : memref<8x8x32xf32, #tpu.memory_space<vmem>>, vector<8x8x32xf32>
    %122 = vector.broadcast %120 : vector<1x1x32xf32> to vector<8x8x32xf32>
    %123 = arith.mulf %121, %122 : vector<8x8x32xf32>
    %cst_64 = arith.constant dense<0.000000e+00> : vector<8x8xf32>
    %124 = vector.multi_reduction <add>, %123, %cst_64 [2] : vector<8x8x32xf32> to vector<8x8xf32>
    %c0_65 = arith.constant 0 : index
    %c0_66 = arith.constant 0 : index
    %125 = vector.load %arg7[%c0_65, %c0_66] : memref<1x1xf32, #tpu.memory_space<vmem>>, vector<1x1xf32>
    %126 = vector.broadcast %125 : vector<1x1xf32> to vector<8x8xf32>
    %127 = arith.addf %124, %126 : vector<8x8xf32>
    %c0_67 = arith.constant 0 : index
    %c0_68 = arith.constant 0 : index
    %128 = vector.load %arg8[%c0_67, %c0_68] : memref<8x8xf32, #tpu.memory_space<vmem>>, vector<8x8xf32>
    tpu.vector_store %arg8[%c0_67, %c0_68], %127 {strides = array<i32>} : memref<8x8xf32, #tpu.memory_space<vmem>>, vector<8x8xf32>,
    return
  }
  func.func @transform_0(%arg0: i32) -> (i32, i32) {
    %c0_i32 = arith.constant 0 : i32
    %c0_i32_0 = arith.constant 0 : i32
    %c0_i32_1 = arith.constant 0 : i32
    return %c0_i32, %c0_i32_0 : i32, i32
  }
  func.func @transform_1(%arg0: i32) -> (i32, i32) {
    %c0_i32 = arith.constant 0 : i32
    %c0_i32_0 = arith.constant 0 : i32
    %c0_i32_1 = arith.constant 0 : i32
    return %c0_i32, %c0_i32_0 : i32, i32
  }
  func.func @transform_2(%arg0: i32) -> (i32, i32, i32) {
    %c0_i32 = arith.constant 0 : i32
    %c0_i32_0 = arith.constant 0 : i32
    %c0_i32_1 = arith.constant 0 : i32
    %c0_i32_2 = arith.constant 0 : i32
    return %c0_i32, %c0_i32_0, %c0_i32_1 : i32, i32, i32
  }
  func.func @transform_3(%arg0: i32) -> (i32, i32, i32) {
    %c0_i32 = arith.constant 0 : i32
    %c0_i32_0 = arith.constant 0 : i32
    %c0_i32_1 = arith.constant 0 : i32
    %c0_i32_2 = arith.constant 0 : i32
    return %c0_i32, %c0_i32_0, %c0_i32_1 : i32, i32, i32
  }
  func.func @transform_4(%arg0: i32) -> (i32, i32) {
    %c0_i32 = arith.constant 0 : i32
    %c0_i32_0 = arith.constant 0 : i32
    %c0_i32_1 = arith.constant 0 : i32
    return %c0_i32, %c0_i32_0 : i32, i32
  }
  func.func @transform_5(%arg0: i32) -> (i32, i32) {
    %c0_i32 = arith.constant 0 : i32
    %c0_i32_0 = arith.constant 0 : i32
    %c0_i32_1 = arith.constant 0 : i32
    return %c0_i32, %c0_i32_0 : i32, i32
  }
  func.func @transform_6(%arg0: i32) -> (i32, i32) {
    %c0_i32 = arith.constant 0 : i32
    %c0_i32_0 = arith.constant 0 : i32
    %c0_i32_1 = arith.constant 0 : i32
    return %c0_i32, %c0_i32_0 : i32, i32
  }
  func.func @transform_7(%arg0: i32) -> (i32, i32) {
    %c0_i32 = arith.constant 0 : i32
    %c0_i32_0 = arith.constant 0 : i32
    %c0_i32_1 = arith.constant 0 : i32
    return %c0_i32, %c0_i32_0 : i32, i32
  }
}

</mosaic_0001>

<llo_original>
// kernel: tpu_custom_call.1
$region0: #{tpu_custom_call.1}
  #allocation0 [shape = 'u32[]', space=smem, size = 0x4, offset = 0x4, fixed_abs, tag = 'smem constant byte address 0x4 - core index']
  #allocation1 [shape = 'u32[144,128]{1,0:T(1,128)}', space=vmem, size = 0x12000, scoped, tag = 'internal scratch']
  #allocation2 [shape = 'f32[8,8,32]{2,1,0:T(8,128)}', space=vmem, size = 0x8000, scoped, tag = 'scratch operand']
  #allocation3 [shape = 'f32[1,1]{1,0:T(1,128)S(1)}', space=vmem, size = 0x200, scoped, tag = 'scoped memory for tpu_custom_call.1']
  %s0 = inlined_call_operand.vmem [shape: f32[64,16], index: 0, kind: input, shape index: {}]
  %s1 = inlined_call_operand.vmem [shape: f32[16,32], index: 1, kind: input, shape index: {}]
  %s2 = inlined_call_operand.hbm [shape: f32[1,32,32], index: 2, kind: input, shape index: {}]
  %s3 = inlined_call_operand.vmem [shape: f32[2,32,32], index: 3, kind: input, shape index: {}]
  %s4 = inlined_call_operand.vmem [shape: f32[2,32], index: 4, kind: input, shape index: {}]
  %s5 = inlined_call_operand.vmem [shape: f32[1,32], index: 5, kind: input, shape index: {}]
  %s6 = inlined_call_operand.<no memory space> [shape: f32[1,1], index: 6, kind: input, shape index: {}]
  %s7 = inlined_call_operand.hbm [shape: f32[8,8], index: 7, kind: output, shape index: {}]
  %s8 = sld [smem:[#allocation0]]
  $region42: #{tpu_custom_call.1} parent=0
    _
  %s10 = ssub.s32 1, %s8
  %s11 = scalar_select 0, %s10, %s8
  %v12 = vstv %s6
  %13 = vst [vmem:[#allocation3] sm:$0x1] %v12
  $region1: #{tpu_custom_call.1} parent=0
    #allocation4 [shape = 'u8[16384]{0}', space=vmem, size = 0x4000, scoped, tag = 'input window, operand 2, single buffered']
    #allocation5 [shape = 's32[1]{0}', space=sflag, size = 0x4, scoped, tag = 'scoped memory for tpu_custom_call.1']
    #allocation6 [shape = 's32[1]{0}', space=sflag, size = 0x4, scoped, tag = 'scoped memory for tpu_custom_call.1']
    #allocation7 [shape = 'u8[4096]{0}', space=vmem, size = 0x1000, scoped, tag = 'output window, operand 0, single buffered']
    %14 = vsyncpa [#allocation5], 0
    %15 = vsyncpa [#allocation6], 0
    // Predicated region
    $region2: #{tpu_custom_call.1} parent=1 // pred_check
      _
    $region3: #{tpu_custom_call.1} parent=1 // pred_check_branch
      %17 = sbr.rel (0) target = $region5
    $region4: #{tpu_custom_call.1} parent=1 // pred_region
      _
    $region5: #{tpu_custom_call.1} parent=1 // pred_fallthru
      _
    // Predicated region
    $region6: #{tpu_custom_call.1} parent=1 // pred_check
      _
    $region7: #{tpu_custom_call.1} parent=1 // pred_check_branch
      %19 = sbr.rel (0) target = $region9
    $region8: #{tpu_custom_call.1} parent=1 // pred_region
      _
    $region9: #{tpu_custom_call.1} parent=1 // pred_fallthru
      _
    // Predicated region
    $region10: #{tpu_custom_call.1} parent=1 // pred_check
      _
    $region11: #{tpu_custom_call.1} parent=1 // pred_check_branch
      %21 = sbr.rel (0) target = $region13
    $region12: #{tpu_custom_call.1} parent=1 // pred_region
      %s23 = ssub.s32 512, 512
      %24 = vsyncadd [#allocation5], %s23
      %s25 = sshll.u32 [#allocation4], 4
      %s26 = int_to_ptr.vmem [resolvable:$true] %s25
      %31 = dma.hbm_to_vmem [thread:$0]  %s2, 512, %s26, [#allocation5], 128, 128, 8
    $region13: #{tpu_custom_call.1} parent=1 // pred_fallthru
      _
    // Predicated region
    $region14: #{tpu_custom_call.1} parent=1 // pred_check
      _
    $region15: #{tpu_custom_call.1} parent=1 // pred_check_branch
      %33 = sbr.rel (0) target = $region17
    $region16: #{tpu_custom_call.1} parent=1 // pred_region
      _
    $region17: #{tpu_custom_call.1} parent=1 // pred_fallthru
      _
    // Predicated region
    $region18: #{tpu_custom_call.1} parent=1 // pred_check
      _
    $region19: #{tpu_custom_call.1} parent=1 // pred_check_branch
      %35 = sbr.rel (0) target = $region21
    $region20: #{tpu_custom_call.1} parent=1 // pred_region
      _
    $region21: #{tpu_custom_call.1} parent=1 // pred_fallthru
      _
    // Predicated region
    $region22: #{tpu_custom_call.1} parent=1 // pred_check
      _
    $region23: #{tpu_custom_call.1} parent=1 // pred_check_branch
      %37 = sbr.rel (0) target = $region25
    $region24: #{tpu_custom_call.1} parent=1 // pred_region
      _
    $region25: #{tpu_custom_call.1} parent=1 // pred_fallthru
      _
    // Predicated region
    $region26: #{tpu_custom_call.1} parent=1 // pred_check
      _
    $region27: #{tpu_custom_call.1} parent=1 // pred_check_branch
      %39 = sbr.rel (0) target = $region29
    $region28: #{tpu_custom_call.1} parent=1 // pred_region
      _
    $region29: #{tpu_custom_call.1} parent=1 // pred_fallthru
      _
    // Predicated region
    $region30: #{tpu_custom_call.1} parent=1 // pred_check
      _
    $region31: #{tpu_custom_call.1} parent=1 // pred_check_branch
      %41 = sbr.rel (0) target = $region33
    $region32: #{tpu_custom_call.1} parent=1 // pred_region
      %42 = dma.done [#allocation5], 512
    $region33: #{tpu_custom_call.1} parent=1 // pred_fallthru
      _
    %v43 = vld [vmem:[%s1] sm:$0xff]
    %v44 = vld [vmem:[%s1 + $0x8] sm:$0xff]
    %v45 = vld [vmem:[%s3] sm:$0xff]
    %v46 = vld [vmem:[%s3 + $0x8] sm:$0xff]
    %v47 = vld [vmem:[%s3 + $0x10] sm:$0xff]
    %v48 = vld [vmem:[%s3 + $0x18] sm:$0xff]
    %s49 = scalar_lea.vmem %s3, 32
    %v50 = vld [vmem:[%s49] sm:$0xff]
    %v51 = vld [vmem:[%s49 + $0x8] sm:$0xff]
    %v52 = vld [vmem:[%s49 + $0x10] sm:$0xff]
    %v53 = vld [vmem:[%s49 + $0x18] sm:$0xff]
    %v54 = vld [vmem:[#allocation4] sm:$0xff]
    %v55 = vld [vmem:[#allocation4 + $0x8] sm:$0xff]
    %v56 = vld [vmem:[#allocation4 + $0x10] sm:$0xff]
    %v57 = vld [vmem:[#allocation4 + $0x18] sm:$0xff]
    %v58 = vld [vmem:[%s4] sm:$0x1]
    %v59 = vld [vmem:[%s4 + $0x1] sm:$0x1]
    %v60 = vld [vmem:[%s0] sm:$0xff]
    %v61 = vld [vmem:[%s0 + $0x8] sm:$0xff]
    %v62 = vld [vmem:[%s0 + $0x10] sm:$0xff]
    %v63 = vld [vmem:[%s0 + $0x18] sm:$0xff]
    %v64 = vld [vmem:[%s0 + $0x20] sm:$0xff]
    %v65 = vld [vmem:[%s0 + $0x28] sm:$0xff]
    %v66 = vld [vmem:[%s0 + $0x30] sm:$0xff]
    %v67 = vld [vmem:[%s0 + $0x38] sm:$0xff]
    %v68 = vlaneseq
    %v69 = vshrl.u32 %v68, 7
    %v70 = vsub.s32 0, %v69
    %v71 = vrot.slane %v58, %v70
    %vm72 = vcmask 130048
    %v74 = vsel %vm72, %v60, 0
    %v77 = vsel %vm72, %v61, 0
    %v80 = vsel %vm72, %v62, 0
    %v83 = vsel %vm72, %v63, 0
    %v86 = vsel %vm72, %v64, 0
    %v89 = vsel %vm72, %v65, 0
    %v92 = vsel %vm72, %v66, 0
    %v95 = vsel %vm72, %v67, 0
    %97 = vmatprep.subr.mxu0 0.0
    %98 = vmatpush1.msra.mxu0 0.0
    %99 = vmatprep.subr.mxu0 0.0
    %100 = vmatpush1.msra.mxu0 0.0
    %101 = vmatprep.subr.mxu0 0.0
    %102 = vmatpush1.msra.mxu0 0.0
    %103 = vmatprep.subr.mxu0 0.0
    %104 = vmatpush1.msra.mxu0 0.0
    %105 = vmatprep.subr.mxu0 0.0
    %106 = vmatpush1.msra.mxu0 0.0
    %107 = vmatprep.subr.mxu0 0.0
    %108 = vmatpush1.msra.mxu0 0.0
    %109 = vmatprep.subr.mxu0 0.0
    %110 = vmatpush1.msra.mxu0 0.0
    %111 = vmatprep.subr.mxu0 0.0
    %112 = vmatpush1.msra.mxu0 0.0
    %113 = vmatprep.subr.mxu0 0.0
    %114 = vmatpush1.msra.mxu0 0.0
    %115 = vmatprep.subr.mxu0 0.0
    %116 = vmatpush1.msra.mxu0 0.0
    %117 = vmatprep.subr.mxu0 0.0
    %118 = vmatpush1.msra.mxu0 0.0
    %119 = vmatprep.subr.mxu0 0.0
    %120 = vmatpush1.msra.mxu0 0.0
    %121 = vmatprep.subr.mxu0 0.0
    %122 = vmatpush1.msra.mxu0 0.0
    %123 = vmatprep.subr.mxu0 0.0
    %124 = vmatpush1.msra.mxu0 0.0
    %125 = vmatprep.subr.mxu0 0.0
    %126 = vmatpush1.msra.mxu0 %v44
    %127 = vmatprep.subr.mxu0 0.0
    %128 = vmatpush1.msra.mxu0 %v43
    %129 = vmatprep.subr.mxu0 0.0
    %130 = vmatpush2.msra.mxu0 0.0
    %131 = vmatprep.subr.mxu0 0.0
    %132 = vmatpush2.msra.mxu0 0.0
    %133 = vmatprep.subr.mxu0 0.0
    %134 = vmatpush2.msra.mxu0 0.0
    %135 = vmatprep.subr.mxu0 0.0
    %136 = vmatpush2.msra.mxu0 0.0
    %137 = vmatprep.subr.mxu0 0.0
    %138 = vmatpush2.msra.mxu0 0.0
    %139 = vmatprep.subr.mxu0 0.0
    %140 = vmatpush2.msra.mxu0 0.0
    %141 = vmatprep.subr.mxu0 0.0
    %142 = vmatpush2.msra.mxu0 0.0
    %143 = vmatprep.subr.mxu0 0.0
    %144 = vmatpush2.msra.mxu0 0.0
    %145 = vmatprep.subr.mxu0 0.0
    %146 = vmatpush2.msra.mxu0 0.0
    %147 = vmatprep.subr.mxu0 0.0
    %148 = vmatpush2.msra.mxu0 0.0
    %149 = vmatprep.subr.mxu0 0.0
    %150 = vmatpush2.msra.mxu0 0.0
    %151 = vmatprep.subr.mxu0 0.0
    %152 = vmatpush2.msra.mxu0 0.0
    %153 = vmatprep.subr.mxu0 0.0
    %154 = vmatpush2.msra.mxu0 0.0
    %155 = vmatprep.subr.mxu0 0.0
    %156 = vmatpush2.msra.mxu0 0.0
    %157 = vmatprep.subr.mxu0 0.0
    %158 = vmatpush2.msra.mxu0 0.0
    %159 = vmatprep.subr.mxu0 0.0
    %160 = vmatpush2.msra.mxu0 0.0
    %161 = vmatprep.mubr.f32.mxu0 0.0
    %162 = vmatmul.mubr.f32.gmra.mxu0 %v74
    %v163 = vpop.f32.mrf.mxu0
    %v164 = vadd.f32 %v71, %v163
    %v165 = vpop.f32.mrf.mxu0
    %166 = vmatprep.mubr.f32.mxu0 0.0
    %167 = vmatmul.mubr.f32.gmra.mxu0 %v77
    %v168 = vpop.f32.mrf.mxu0
    %v169 = vadd.f32 %v71, %v168
    %v170 = vpop.f32.mrf.mxu0
    %171 = vmatprep.mubr.f32.mxu0 0.0
    %172 = vmatmul.mubr.f32.gmra.mxu0 %v80
    %v173 = vpop.f32.mrf.mxu0
    %v174 = vadd.f32 %v71, %v173
    %v175 = vpop.f32.mrf.mxu0
    %176 = vmatprep.mubr.f32.mxu0 0.0
    %177 = vmatmul.mubr.f32.gmra.mxu0 %v83
    %v178 = vpop.f32.mrf.mxu0
    %v179 = vadd.f32 %v71, %v178
    %v180 = vpop.f32.mrf.mxu0
    %181 = vmatprep.mubr.f32.mxu0 0.0
    %182 = vmatmul.mubr.f32.gmra.mxu0 %v86
    %v183 = vpop.f32.mrf.mxu0
    %v184 = vadd.f32 %v71, %v183
    %v185 = vpop.f32.mrf.mxu0
    %186 = vmatprep.mubr.f32.mxu0 0.0
    %187 = vmatmul.mubr.f32.gmra.mxu0 %v89
    %v188 = vpop.f32.mrf.mxu0
    %v189 = vadd.f32 %v71, %v188
    %v190 = vpop.f32.mrf.mxu0
    %191 = vmatprep.mubr.f32.mxu0 0.0
    %192 = vmatmul.mubr.f32.gmra.mxu0 %v92
    %v193 = vpop.f32.mrf.mxu0
    %v194 = vadd.f32 %v71, %v193
    %v195 = vpop.f32.mrf.mxu0
    %196 = vmatprep.mubr.f32.mxu0 0.0
    %197 = vmatmul.mubr.f32.gmra.mxu0 %v95
    %v198 = vpop.f32.mrf.mxu0
    %v199 = vadd.f32 %v71, %v198
    %v200 = vpop.f32.mrf.mxu0
    %201 = vdwg.mxu0
    %vm202 = vcmask 261120
    %v204 = vsel %vm202, 0.0, 0
    %206 = vmatprep.subr.mxu0 0.0
    %207 = vmatpush1.msra.mxu0 0.0
    %208 = vmatprep.subr.mxu0 0.0
    %209 = vmatpush1.msra.mxu0 0.0
    %210 = vmatprep.subr.mxu0 0.0
    %211 = vmatpush1.msra.mxu0 0.0
    %212 = vmatprep.subr.mxu0 0.0
    %213 = vmatpush1.msra.mxu0 0.0
    %214 = vmatprep.subr.mxu0 0.0
    %215 = vmatpush1.msra.mxu0 0.0
    %216 = vmatprep.subr.mxu0 0.0
    %217 = vmatpush1.msra.mxu0 0.0
    %218 = vmatprep.subr.mxu0 0.0
    %219 = vmatpush1.msra.mxu0 0.0
    %220 = vmatprep.subr.mxu0 0.0
    %221 = vmatpush1.msra.mxu0 0.0
    %222 = vmatprep.subr.mxu0 0.0
    %223 = vmatpush1.msra.mxu0 0.0
    %224 = vmatprep.subr.mxu0 0.0
    %225 = vmatpush1.msra.mxu0 0.0
    %226 = vmatprep.subr.mxu0 0.0
    %227 = vmatpush1.msra.mxu0 0.0
    %228 = vmatprep.subr.mxu0 0.0
    %229 = vmatpush1.msra.mxu0 0.0
    %230 = vmatprep.subr.mxu0 0.0
    %231 = vmatpush1.msra.mxu0 %v48
    %232 = vmatprep.subr.mxu0 0.0
    %233 = vmatpush1.msra.mxu0 %v47
    %234 = vmatprep.subr.mxu0 0.0
    %235 = vmatpush1.msra.mxu0 %v46
    %236 = vmatprep.subr.mxu0 0.0
    %237 = vmatpush1.msra.mxu0 %v45
    %238 = vmatprep.subr.mxu0 0.0
    %239 = vmatpush2.msra.mxu0 0.0
    %240 = vmatprep.subr.mxu0 0.0
    %241 = vmatpush2.msra.mxu0 0.0
    %242 = vmatprep.subr.mxu0 0.0
    %243 = vmatpush2.msra.mxu0 0.0
    %244 = vmatprep.subr.mxu0 0.0
    %245 = vmatpush2.msra.mxu0 0.0
    %246 = vmatprep.subr.mxu0 0.0
    %247 = vmatpush2.msra.mxu0 0.0
    %248 = vmatprep.subr.mxu0 0.0
    %249 = vmatpush2.msra.mxu0 0.0
    %250 = vmatprep.subr.mxu0 0.0
    %251 = vmatpush2.msra.mxu0 0.0
    %252 = vmatprep.subr.mxu0 0.0
    %253 = vmatpush2.msra.mxu0 0.0
    %254 = vmatprep.subr.mxu0 0.0
    %255 = vmatpush2.msra.mxu0 0.0
    %256 = vmatprep.subr.mxu0 0.0
    %257 = vmatpush2.msra.mxu0 0.0
    %258 = vmatprep.subr.mxu0 0.0
    %259 = vmatpush2.msra.mxu0 0.0
    %260 = vmatprep.subr.mxu0 0.0
    %261 = vmatpush2.msra.mxu0 0.0
    %262 = vmatprep.subr.mxu0 0.0
    %263 = vmatpush2.msra.mxu0 0.0
    %264 = vmatprep.subr.mxu0 0.0
    %265 = vmatpush2.msra.mxu0 0.0
    %266 = vmatprep.subr.mxu0 0.0
    %267 = vmatpush2.msra.mxu0 0.0
    %268 = vmatprep.subr.mxu0 0.0
    %269 = vmatpush2.msra.mxu0 0.0
    %270 = vmatprep.mubr.f32.mxu0 0.0
    %271 = vmatmul.mubr.f32.gmra.mxu0 %v204
    %v272 = vpop.f32.mrf.mxu0
    %v273 = vadd.f32 0.0, %v272
    %v274 = vpop.f32.mrf.mxu0
    %275 = vdwg.mxu0
    %v276 = vadd.f32 %v164, %v273
    %v277 = vtanh.pop %v276
    %278 = vmatprep.subr.mxu0 0.0
    %279 = vmatpush1.msra.mxu0 0.0
    %280 = vmatprep.subr.mxu0 0.0
    %281 = vmatpush1.msra.mxu0 0.0
    %282 = vmatprep.subr.mxu0 0.0
    %283 = vmatpush1.msra.mxu0 0.0
    %284 = vmatprep.subr.mxu0 0.0
    %285 = vmatpush1.msra.mxu0 0.0
    %286 = vmatprep.subr.mxu0 0.0
    %287 = vmatpush1.msra.mxu0 0.0
    %288 = vmatprep.subr.mxu0 0.0
    %289 = vmatpush1.msra.mxu0 0.0
    %290 = vmatprep.subr.mxu0 0.0
    %291 = vmatpush1.msra.mxu0 0.0
    %292 = vmatprep.subr.mxu0 0.0
    %293 = vmatpush1.msra.mxu0 0.0
    %294 = vmatprep.subr.mxu0 0.0
    %295 = vmatpush1.msra.mxu0 0.0
    %296 = vmatprep.subr.mxu0 0.0
    %297 = vmatpush1.msra.mxu0 0.0
    %298 = vmatprep.subr.mxu0 0.0
    %299 = vmatpush1.msra.mxu0 0.0
    %300 = vmatprep.subr.mxu0 0.0
    %301 = vmatpush1.msra.mxu0 0.0
    %302 = vmatprep.subr.mxu0 0.0
    %303 = vmatpush1.msra.mxu0 %v53
    %304 = vmatprep.subr.mxu0 0.0
    %305 = vmatpush1.msra.mxu0 %v52
    %306 = vmatprep.subr.mxu0 0.0
    %307 = vmatpush1.msra.mxu0 %v51
    %308 = vmatprep.subr.mxu0 0.0
    %309 = vmatpush1.msra.mxu0 %v50
    %310 = vmatprep.subr.mxu0 0.0
    %311 = vmatpush2.msra.mxu0 0.0
    %312 = vmatprep.subr.mxu0 0.0
    %313 = vmatpush2.msra.mxu0 0.0
    %314 = vmatprep.subr.mxu0 0.0
    %315 = vmatpush2.msra.mxu0 0.0
    %316 = vmatprep.subr.mxu0 0.0
    %317 = vmatpush2.msra.mxu0 0.0
    %318 = vmatprep.subr.mxu0 0.0
    %319 = vmatpush2.msra.mxu0 0.0
    %320 = vmatprep.subr.mxu0 0.0
    %321 = vmatpush2.msra.mxu0 0.0
    %322 = vmatprep.subr.mxu0 0.0
    %323 = vmatpush2.msra.mxu0 0.0
    %324 = vmatprep.subr.mxu0 0.0
    %325 = vmatpush2.msra.mxu0 0.0
    %326 = vmatprep.subr.mxu0 0.0
    %327 = vmatpush2.msra.mxu0 0.0
    %328 = vmatprep.subr.mxu0 0.0
    %329 = vmatpush2.msra.mxu0 0.0
    %330 = vmatprep.subr.mxu0 0.0
    %331 = vmatpush2.msra.mxu0 0.0
    %332 = vmatprep.subr.mxu0 0.0
    %333 = vmatpush2.msra.mxu0 0.0
    %334 = vmatprep.subr.mxu0 0.0
    %335 = vmatpush2.msra.mxu0 0.0
    %336 = vmatprep.subr.mxu0 0.0
    %337 = vmatpush2.msra.mxu0 0.0
    %338 = vmatprep.subr.mxu0 0.0
    %339 = vmatpush2.msra.mxu0 0.0
    %340 = vmatprep.subr.mxu0 0.0
    %341 = vmatpush2.msra.mxu0 0.0
    %342 = vmatprep.mubr.f32.mxu0 0.0
    %343 = vmatmul.mubr.f32.gmra.mxu0 %v204
    %v344 = vpop.f32.mrf.mxu0
    %v345 = vadd.f32 0.0, %v344
    %v346 = vpop.f32.mrf.mxu0
    %347 = vdwg.mxu0
    %v349 = vsel %vm202, %v277, 0
    %351 = vmatprep.subr.mxu0 0.0
    %352 = vmatpush1.msra.mxu0 0.0
    %353 = vmatprep.subr.mxu0 0.0
    %354 = vmatpush1.msra.mxu0 0.0
    %355 = vmatprep.subr.mxu0 0.0
    %356 = vmatpush1.msra.mxu0 0.0
    %357 = vmatprep.subr.mxu0 0.0
    %358 = vmatpush1.msra.mxu0 0.0
    %359 = vmatprep.subr.mxu0 0.0
    %360 = vmatpush1.msra.mxu0 0.0
    %361 = vmatprep.subr.mxu0 0.0
    %362 = vmatpush1.msra.mxu0 0.0
    %363 = vmatprep.subr.mxu0 0.0
    %364 = vmatpush1.msra.mxu0 0.0
    %365 = vmatprep.subr.mxu0 0.0
    %366 = vmatpush1.msra.mxu0 0.0
    %367 = vmatprep.subr.mxu0 0.0
    %368 = vmatpush1.msra.mxu0 0.0
    %369 = vmatprep.subr.mxu0 0.0
    %370 = vmatpush1.msra.mxu0 0.0
    %371 = vmatprep.subr.mxu0 0.0
    %372 = vmatpush1.msra.mxu0 0.0
    %373 = vmatprep.subr.mxu0 0.0
    %374 = vmatpush1.msra.mxu0 0.0
    %375 = vmatprep.subr.mxu0 0.0
    %376 = vmatpush1.msra.mxu0 %v57
    %377 = vmatprep.subr.mxu0 0.0
    %378 = vmatpush1.msra.mxu0 %v56
    %379 = vmatprep.subr.mxu0 0.0
    %380 = vmatpush1.msra.mxu0 %v55
    %381 = vmatprep.subr.mxu0 0.0
    %382 = vmatpush1.msra.mxu0 %v54
    %383 = vmatprep.subr.mxu0 0.0
    %384 = vmatpush2.msra.mxu0 0.0
    %385 = vmatprep.subr.mxu0 0.0
    %386 = vmatpush2.msra.mxu0 0.0
    %387 = vmatprep.subr.mxu0 0.0
    %388 = vmatpush2.msra.mxu0 0.0
    %389 = vmatprep.subr.mxu0 0.0
    %390 = vmatpush2.msra.mxu0 0.0
    %391 = vmatprep.subr.mxu0 0.0
    %392 = vmatpush2.msra.mxu0 0.0
    %393 = vmatprep.subr.mxu0 0.0
    %394 = vmatpush2.msra.mxu0 0.0
    %395 = vmatprep.subr.mxu0 0.0
    %396 = vmatpush2.msra.mxu0 0.0
    %397 = vmatprep.subr.mxu0 0.0
    %398 = vmatpush2.msra.mxu0 0.0
    %399 = vmatprep.subr.mxu0 0.0
    %400 = vmatpush2.msra.mxu0 0.0
    %401 = vmatprep.subr.mxu0 0.0
    %402 = vmatpush2.msra.mxu0 0.0
    %403 = vmatprep.subr.mxu0 0.0
    %404 = vmatpush2.msra.mxu0 0.0
    %405 = vmatprep.subr.mxu0 0.0
    %406 = vmatpush2.msra.mxu0 0.0
    %407 = vmatprep.subr.mxu0 0.0
    %408 = vmatpush2.msra.mxu0 0.0
    %409 = vmatprep.subr.mxu0 0.0
    %410 = vmatpush2.msra.mxu0 0.0
    %411 = vmatprep.subr.mxu0 0.0
    %412 = vmatpush2.msra.mxu0 0.0
    %413 = vmatprep.subr.mxu0 0.0
    %414 = vmatpush2.msra.mxu0 0.0
    %415 = vmatprep.mubr.f32.mxu0 0.0
    %416 = vmatmul.mubr.f32.gmra.mxu0 %v349
    %v417 = vpop.f32.mrf.mxu0
    %v418 = vadd.f32 %v345, %v417
    %v419 = vpop.f32.mrf.mxu0
    %420 = vdwg.mxu0
    %v421 = vlaneseq
    %v422 = vshrl.u32 %v421, 7
    %v423 = vsub.s32 0, %v422
    %v424 = vrot.slane %v59, %v423
    %v425 = vadd.f32 %v418, %v424
    %v426 = vtanh.pop %v425
    %427 = vst.msk [vmem:[#allocation2] sm:$0xff] %vm202, %v426
    %428 = vmatprep.subr.mxu0 0.0
    %429 = vmatpush1.msra.mxu0 0.0
    %430 = vmatprep.subr.mxu0 0.0
    %431 = vmatpush1.msra.mxu0 0.0
    %432 = vmatprep.subr.mxu0 0.0
    %433 = vmatpush1.msra.mxu0 0.0
    %434 = vmatprep.subr.mxu0 0.0
    %435 = vmatpush1.msra.mxu0 0.0
    %436 = vmatprep.subr.mxu0 0.0
    %437 = vmatpush1.msra.mxu0 0.0
    %438 = vmatprep.subr.mxu0 0.0
    %439 = vmatpush1.msra.mxu0 0.0
    %440 = vmatprep.subr.mxu0 0.0
    %441 = vmatpush1.msra.mxu0 0.0
    %442 = vmatprep.subr.mxu0 0.0
    %443 = vmatpush1.msra.mxu0 0.0
    %444 = vmatprep.subr.mxu0 0.0
    %445 = vmatpush1.msra.mxu0 0.0
    %446 = vmatprep.subr.mxu0 0.0
    %447 = vmatpush1.msra.mxu0 0.0
    %448 = vmatprep.subr.mxu0 0.0
    %449 = vmatpush1.msra.mxu0 0.0
    %450 = vmatprep.subr.mxu0 0.0
    %451 = vmatpush1.msra.mxu0 0.0
    %452 = vmatprep.subr.mxu0 0.0
    %453 = vmatpush1.msra.mxu0 %v48
    %454 = vmatprep.subr.mxu0 0.0
    %455 = vmatpush1.msra.mxu0 %v47
    %456 = vmatprep.subr.mxu0 0.0
    %457 = vmatpush1.msra.mxu0 %v46
    %458 = vmatprep.subr.mxu0 0.0
    %459 = vmatpush1.msra.mxu0 %v45
    %460 = vmatprep.subr.mxu0 0.0
    %461 = vmatpush2.msra.mxu0 0.0
    %462 = vmatprep.subr.mxu0 0.0
    %463 = vmatpush2.msra.mxu0 0.0
    %464 = vmatprep.subr.mxu0 0.0
    %465 = vmatpush2.msra.mxu0 0.0
    %466 = vmatprep.subr.mxu0 0.0
    %467 = vmatpush2.msra.mxu0 0.0
    %468 = vmatprep.subr.mxu0 0.0
    %469 = vmatpush2.msra.mxu0 0.0
    %470 = vmatprep.subr.mxu0 0.0
    %471 = vmatpush2.msra.mxu0 0.0
    %472 = vmatprep.subr.mxu0 0.0
    %473 = vmatpush2.msra.mxu0 0.0
    %474 = vmatprep.subr.mxu0 0.0
    %475 = vmatpush2.msra.mxu0 0.0
    %476 = vmatprep.subr.mxu0 0.0
    %477 = vmatpush2.msra.mxu0 0.0
    %478 = vmatprep.subr.mxu0 0.0
    %479 = vmatpush2.msra.mxu0 0.0
    %480 = vmatprep.subr.mxu0 0.0
    %481 = vmatpush2.msra.mxu0 0.0
    %482 = vmatprep.subr.mxu0 0.0
    %483 = vmatpush2.msra.mxu0 0.0
    %484 = vmatprep.subr.mxu0 0.0
    %485 = vmatpush2.msra.mxu0 0.0
    %486 = vmatprep.subr.mxu0 0.0
    %487 = vmatpush2.msra.mxu0 0.0
    %488 = vmatprep.subr.mxu0 0.0
    %489 = vmatpush2.msra.mxu0 0.0
    %490 = vmatprep.subr.mxu0 0.0
    %491 = vmatpush2.msra.mxu0 0.0
    %492 = vmatprep.mubr.f32.mxu0 0.0
    %493 = vmatmul.mubr.f32.gmra.mxu0 %v349
    %v494 = vpop.f32.mrf.mxu0
    %v495 = vadd.f32 0.0, %v494
    %v496 = vpop.f32.mrf.mxu0
    %497 = vdwg.mxu0
    %v498 = vadd.f32 %v169, %v495
    %v499 = vtanh.pop %v498
    %v501 = vsel %vm202, %v426, 0
    %503 = vmatprep.subr.mxu0 0.0
    %504 = vmatpush1.msra.mxu0 0.0
    %505 = vmatprep.subr.mxu0 0.0
    %506 = vmatpush1.msra.mxu0 0.0
    %507 = vmatprep.subr.mxu0 0.0
    %508 = vmatpush1.msra.mxu0 0.0
    %509 = vmatprep.subr.mxu0 0.0
    %510 = vmatpush1.msra.mxu0 0.0
    %511 = vmatprep.subr.mxu0 0.0
    %512 = vmatpush1.msra.mxu0 0.0
    %513 = vmatprep.subr.mxu0 0.0
    %514 = vmatpush1.msra.mxu0 0.0
    %515 = vmatprep.subr.mxu0 0.0
    %516 = vmatpush1.msra.mxu0 0.0
    %517 = vmatprep.subr.mxu0 0.0
    %518 = vmatpush1.msra.mxu0 0.0
    %519 = vmatprep.subr.mxu0 0.0
    %520 = vmatpush1.msra.mxu0 0.0
    %521 = vmatprep.subr.mxu0 0.0
    %522 = vmatpush1.msra.mxu0 0.0
    %523 = vmatprep.subr.mxu0 0.0
    %524 = vmatpush1.msra.mxu0 0.0
    %525 = vmatprep.subr.mxu0 0.0
    %526 = vmatpush1.msra.mxu0 0.0
    %527 = vmatprep.subr.mxu0 0.0
    %528 = vmatpush1.msra.mxu0 %v53
    %529 = vmatprep.subr.mxu0 0.0
    %530 = vmatpush1.msra.mxu0 %v52
    %531 = vmatprep.subr.mxu0 0.0
    %532 = vmatpush1.msra.mxu0 %v51
    %533 = vmatprep.subr.mxu0 0.0
    %534 = vmatpush1.msra.mxu0 %v50
    %535 = vmatprep.subr.mxu0 0.0
    %536 = vmatpush2.msra.mxu0 0.0
    %537 = vmatprep.subr.mxu0 0.0
    %538 = vmatpush2.msra.mxu0 0.0
    %539 = vmatprep.subr.mxu0 0.0
    %540 = vmatpush2.msra.mxu0 0.0
    %541 = vmatprep.subr.mxu0 0.0
    %542 = vmatpush2.msra.mxu0 0.0
    %543 = vmatprep.subr.mxu0 0.0
    %544 = vmatpush2.msra.mxu0 0.0
    %545 = vmatprep.subr.mxu0 0.0
    %546 = vmatpush2.msra.mxu0 0.0
    %547 = vmatprep.subr.mxu0 0.0
    %548 = vmatpush2.msra.mxu0 0.0
    %549 = vmatprep.subr.mxu0 0.0
    %550 = vmatpush2.msra.mxu0 0.0
    %551 = vmatprep.subr.mxu0 0.0
    %552 = vmatpush2.msra.mxu0 0.0
    %553 = vmatprep.subr.mxu0 0.0
    %554 = vmatpush2.msra.mxu0 0.0
    %555 = vmatprep.subr.mxu0 0.0
    %556 = vmatpush2.msra.mxu0 0.0
    %557 = vmatprep.subr.mxu0 0.0
    %558 = vmatpush2.msra.mxu0 0.0
    %559 = vmatprep.subr.mxu0 0.0
    %560 = vmatpush2.msra.mxu0 0.0
    %561 = vmatprep.subr.mxu0 0.0
    %562 = vmatpush2.msra.mxu0 0.0
    %563 = vmatprep.subr.mxu0 0.0
    %564 = vmatpush2.msra.mxu0 0.0
    %565 = vmatprep.subr.mxu0 0.0
    %566 = vmatpush2.msra.mxu0 0.0
    %567 = vmatprep.mubr.f32.mxu0 0.0
    %568 = vmatmul.mubr.f32.gmra.mxu0 %v501
    %v569 = vpop.f32.mrf.mxu0
    %v570 = vadd.f32 0.0, %v569
    %v571 = vpop.f32.mrf.mxu0
    %572 = vdwg.mxu0
    %v574 = vsel %vm202, %v499, 0
    %576 = vmatprep.subr.mxu0 0.0
    %577 = vmatpush1.msra.mxu0 0.0
    %578 = vmatprep.subr.mxu0 0.0
    %579 = vmatpush1.msra.mxu0 0.0
    %580 = vmatprep.subr.mxu0 0.0
    %581 = vmatpush1.msra.mxu0 0.0
    %582 = vmatprep.subr.mxu0 0.0
    %583 = vmatpush1.msra.mxu0 0.0
    %584 = vmatprep.subr.mxu0 0.0
    %585 = vmatpush1.msra.mxu0 0.0
    %586 = vmatprep.subr.mxu0 0.0
    %587 = vmatpush1.msra.mxu0 0.0
    %588 = vmatprep.subr.mxu0 0.0
    %589 = vmatpush1.msra.mxu0 0.0
    %590 = vmatprep.subr.mxu0 0.0
    %591 = vmatpush1.msra.mxu0 0.0
    %592 = vmatprep.subr.mxu0 0.0
    %593 = vmatpush1.msra.mxu0 0.0
    %594 = vmatprep.subr.mxu0 0.0
    %595 = vmatpush1.msra.mxu0 0.0
    %596 = vmatprep.subr.mxu0 0.0
    %597 = vmatpush1.msra.mxu0 0.0
    %598 = vmatprep.subr.mxu0 0.0
    %599 = vmatpush1.msra.mxu0 0.0
    %600 = vmatprep.subr.mxu0 0.0
    %601 = vmatpush1.msra.mxu0 %v57
    %602 = vmatprep.subr.mxu0 0.0
    %603 = vmatpush1.msra.mxu0 %v56
    %604 = vmatprep.subr.mxu0 0.0
    %605 = vmatpush1.msra.mxu0 %v55
    %606 = vmatprep.subr.mxu0 0.0
    %607 = vmatpush1.msra.mxu0 %v54
    %608 = vmatprep.subr.mxu0 0.0
    %609 = vmatpush2.msra.mxu0 0.0
    %610 = vmatprep.subr.mxu0 0.0
    %611 = vmatpush2.msra.mxu0 0.0
    %612 = vmatprep.subr.mxu0 0.0
    %613 = vmatpush2.msra.mxu0 0.0
    %614 = vmatprep.subr.mxu0 0.0
    %615 = vmatpush2.msra.mxu0 0.0
    %616 = vmatprep.subr.mxu0 0.0
    %617 = vmatpush2.msra.mxu0 0.0
    %618 = vmatprep.subr.mxu0 0.0
    %619 = vmatpush2.msra.mxu0 0.0
    %620 = vmatprep.subr.mxu0 0.0
    %621 = vmatpush2.msra.mxu0 0.0
    %622 = vmatprep.subr.mxu0 0.0
    %623 = vmatpush2.msra.mxu0 0.0
    %624 = vmatprep.subr.mxu0 0.0
    %625 = vmatpush2.msra.mxu0 0.0
    %626 = vmatprep.subr.mxu0 0.0
    %627 = vmatpush2.msra.mxu0 0.0
    %628 = vmatprep.subr.mxu0 0.0
    %629 = vmatpush2.msra.mxu0 0.0
    %630 = vmatprep.subr.mxu0 0.0
    %631 = vmatpush2.msra.mxu0 0.0
    %632 = vmatprep.subr.mxu0 0.0
    %633 = vmatpush2.msra.mxu0 0.0
    %634 = vmatprep.subr.mxu0 0.0
    %635 = vmatpush2.msra.mxu0 0.0
    %636 = vmatprep.subr.mxu0 0.0
    %637 = vmatpush2.msra.mxu0 0.0
    %638 = vmatprep.subr.mxu0 0.0
    %639 = vmatpush2.msra.mxu0 0.0
    %640 = vmatprep.mubr.f32.mxu0 0.0
    %641 = vmatmul.mubr.f32.gmra.mxu0 %v574
    %v642 = vpop.f32.mrf.mxu0
    %v643 = vadd.f32 %v570, %v642
    %v644 = vpop.f32.mrf.mxu0
    %645 = vdwg.mxu0
    %v646 = vadd.f32 %v643, %v424
    %v647 = vtanh.pop %v646
    %s648 = scalar_lea.vmem [#allocation2], 8
    %649 = vst.msk [vmem:[%s648] sm:$0xff] %vm202, %v647
    %650 = vmatprep.subr.mxu0 0.0
    %651 = vmatpush1.msra.mxu0 0.0
    %652 = vmatprep.subr.mxu0 0.0
    %653 = vmatpush1.msra.mxu0 0.0
    %654 = vmatprep.subr.mxu0 0.0
    %655 = vmatpush1.msra.mxu0 0.0
    %656 = vmatprep.subr.mxu0 0.0
    %657 = vmatpush1.msra.mxu0 0.0
    %658 = vmatprep.subr.mxu0 0.0
    %659 = vmatpush1.msra.mxu0 0.0
    %660 = vmatprep.subr.mxu0 0.0
    %661 = vmatpush1.msra.mxu0 0.0
    %662 = vmatprep.subr.mxu0 0.0
    %663 = vmatpush1.msra.mxu0 0.0
    %664 = vmatprep.subr.mxu0 0.0
    %665 = vmatpush1.msra.mxu0 0.0
    %666 = vmatprep.subr.mxu0 0.0
    %667 = vmatpush1.msra.mxu0 0.0
    %668 = vmatprep.subr.mxu0 0.0
    %669 = vmatpush1.msra.mxu0 0.0
    %670 = vmatprep.subr.mxu0 0.0
    %671 = vmatpush1.msra.mxu0 0.0
    %672 = vmatprep.subr.mxu0 0.0
    %673 = vmatpush1.msra.mxu0 0.0
    %674 = vmatprep.subr.mxu0 0.0
    %675 = vmatpush1.msra.mxu0 %v48
    %676 = vmatprep.subr.mxu0 0.0
    %677 = vmatpush1.msra.mxu0 %v47
    %678 = vmatprep.subr.mxu0 0.0
    %679 = vmatpush1.msra.mxu0 %v46
    %680 = vmatprep.subr.mxu0 0.0
    %681 = vmatpush1.msra.mxu0 %v45
    %682 = vmatprep.subr.mxu0 0.0
    %683 = vmatpush2.msra.mxu0 0.0
    %684 = vmatprep.subr.mxu0 0.0
    %685 = vmatpush2.msra.mxu0 0.0
    %686 = vmatprep.subr.mxu0 0.0
    %687 = vmatpush2.msra.mxu0 0.0
    %688 = vmatprep.subr.mxu0 0.0
    %689 = vmatpush2.msra.mxu0 0.0
    %690 = vmatprep.subr.mxu0 0.0
    %691 = vmatpush2.msra.mxu0 0.0
    %692 = vmatprep.subr.mxu0 0.0
    %693 = vmatpush2.msra.mxu0 0.0
    %694 = vmatprep.subr.mxu0 0.0
    %695 = vmatpush2.msra.mxu0 0.0
    %696 = vmatprep.subr.mxu0 0.0
    %697 = vmatpush2.msra.mxu0 0.0
    %698 = vmatprep.subr.mxu0 0.0
    %699 = vmatpush2.msra.mxu0 0.0
    %700 = vmatprep.subr.mxu0 0.0
    %701 = vmatpush2.msra.mxu0 0.0
    %702 = vmatprep.subr.mxu0 0.0
    %703 = vmatpush2.msra.mxu0 0.0
    %704 = vmatprep.subr.mxu0 0.0
    %705 = vmatpush2.msra.mxu0 0.0
    %706 = vmatprep.subr.mxu0 0.0
    %707 = vmatpush2.msra.mxu0 0.0
    %708 = vmatprep.subr.mxu0 0.0
    %709 = vmatpush2.msra.mxu0 0.0
    %710 = vmatprep.subr.mxu0 0.0
    %711 = vmatpush2.msra.mxu0 0.0
    %712 = vmatprep.subr.mxu0 0.0
    %713 = vmatpush2.msra.mxu0 0.0
    %714 = vmatprep.mubr.f32.mxu0 0.0
    %715 = vmatmul.mubr.f32.gmra.mxu0 %v574
    %v716 = vpop.f32.mrf.mxu0
    %v717 = vadd.f32 0.0, %v716
    %v718 = vpop.f32.mrf.mxu0
    %719 = vdwg.mxu0
    %v720 = vadd.f32 %v174, %v717
    %v721 = vtanh.pop %v720
    %v723 = vsel %vm202, %v647, 0
    %725 = vmatprep.subr.mxu0 0.0
    %726 = vmatpush1.msra.mxu0 0.0
    %727 = vmatprep.subr.mxu0 0.0
    %728 = vmatpush1.msra.mxu0 0.0
    %729 = vmatprep.subr.mxu0 0.0
    %730 = vmatpush1.msra.mxu0 0.0
    %731 = vmatprep.subr.mxu0 0.0
    %732 = vmatpush1.msra.mxu0 0.0
    %733 = vmatprep.subr.mxu0 0.0
    %734 = vmatpush1.msra.mxu0 0.0
    %735 = vmatprep.subr.mxu0 0.0
    %736 = vmatpush1.msra.mxu0 0.0
    %737 = vmatprep.subr.mxu0 0.0
    %738 = vmatpush1.msra.mxu0 0.0
    %739 = vmatprep.subr.mxu0 0.0
    %740 = vmatpush1.msra.mxu0 0.0
    %741 = vmatprep.subr.mxu0 0.0
    %742 = vmatpush1.msra.mxu0 0.0
    %743 = vmatprep.subr.mxu0 0.0
    %744 = vmatpush1.msra.mxu0 0.0
    %745 = vmatprep.subr.mxu0 0.0
    %746 = vmatpush1.msra.mxu0 0.0
    %747 = vmatprep.subr.mxu0 0.0
    %748 = vmatpush1.msra.mxu0 0.0
    %749 = vmatprep.subr.mxu0 0.0
    %750 = vmatpush1.msra.mxu0 %v53
    %751 = vmatprep.subr.mxu0 0.0
    %752 = vmatpush1.msra.mxu0 %v52
    %753 = vmatprep.subr.mxu0 0.0
    %754 = vmatpush1.msra.mxu0 %v51
    %755 = vmatprep.subr.mxu0 0.0
    %756 = vmatpush1.msra.mxu0 %v50
    %757 = vmatprep.subr.mxu0 0.0
    %758 = vmatpush2.msra.mxu0 0.0
    %759 = vmatprep.subr.mxu0 0.0
    %760 = vmatpush2.msra.mxu0 0.0
    %761 = vmatprep.subr.mxu0 0.0
    %762 = vmatpush2.msra.mxu0 0.0
    %763 = vmatprep.subr.mxu0 0.0
    %764 = vmatpush2.msra.mxu0 0.0
    %765 = vmatprep.subr.mxu0 0.0
    %766 = vmatpush2.msra.mxu0 0.0
    %767 = vmatprep.subr.mxu0 0.0
    %768 = vmatpush2.msra.mxu0 0.0
    %769 = vmatprep.subr.mxu0 0.0
    %770 = vmatpush2.msra.mxu0 0.0
    %771 = vmatprep.subr.mxu0 0.0
    %772 = vmatpush2.msra.mxu0 0.0
    %773 = vmatprep.subr.mxu0 0.0
    %774 = vmatpush2.msra.mxu0 0.0
    %775 = vmatprep.subr.mxu0 0.0
    %776 = vmatpush2.msra.mxu0 0.0
    %777 = vmatprep.subr.mxu0 0.0
    %778 = vmatpush2.msra.mxu0 0.0
    %779 = vmatprep.subr.mxu0 0.0
    %780 = vmatpush2.msra.mxu0 0.0
    %781 = vmatprep.subr.mxu0 0.0
    %782 = vmatpush2.msra.mxu0 0.0
    %783 = vmatprep.subr.mxu0 0.0
    %784 = vmatpush2.msra.mxu0 0.0
    %785 = vmatprep.subr.mxu0 0.0
    %786 = vmatpush2.msra.mxu0 0.0
    %787 = vmatprep.subr.mxu0 0.0
    %788 = vmatpush2.msra.mxu0 0.0
    %789 = vmatprep.mubr.f32.mxu0 0.0
    %790 = vmatmul.mubr.f32.gmra.mxu0 %v723
    %v791 = vpop.f32.mrf.mxu0
    %v792 = vadd.f32 0.0, %v791
    %v793 = vpop.f32.mrf.mxu0
    %794 = vdwg.mxu0
    %v796 = vsel %vm202, %v721, 0
    %798 = vmatprep.subr.mxu0 0.0
    %799 = vmatpush1.msra.mxu0 0.0
    %800 = vmatprep.subr.mxu0 0.0
    %801 = vmatpush1.msra.mxu0 0.0
    %802 = vmatprep.subr.mxu0 0.0
    %803 = vmatpush1.msra.mxu0 0.0
    %804 = vmatprep.subr.mxu0 0.0
    %805 = vmatpush1.msra.mxu0 0.0
    %806 = vmatprep.subr.mxu0 0.0
    %807 = vmatpush1.msra.mxu0 0.0
    %808 = vmatprep.subr.mxu0 0.0
    %809 = vmatpush1.msra.mxu0 0.0
    %810 = vmatprep.subr.mxu0 0.0
    %811 = vmatpush1.msra.mxu0 0.0
    %812 = vmatprep.subr.mxu0 0.0
    %813 = vmatpush1.msra.mxu0 0.0
    %814 = vmatprep.subr.mxu0 0.0
    %815 = vmatpush1.msra.mxu0 0.0
    %816 = vmatprep.subr.mxu0 0.0
    %817 = vmatpush1.msra.mxu0 0.0
    %818 = vmatprep.subr.mxu0 0.0
    %819 = vmatpush1.msra.mxu0 0.0
    %820 = vmatprep.subr.mxu0 0.0
    %821 = vmatpush1.msra.mxu0 0.0
    %822 = vmatprep.subr.mxu0 0.0
    %823 = vmatpush1.msra.mxu0 %v57
    %824 = vmatprep.subr.mxu0 0.0
    %825 = vmatpush1.msra.mxu0 %v56
    %826 = vmatprep.subr.mxu0 0.0
    %827 = vmatpush1.msra.mxu0 %v55
    %828 = vmatprep.subr.mxu0 0.0
    %829 = vmatpush1.msra.mxu0 %v54
    %830 = vmatprep.subr.mxu0 0.0
    %831 = vmatpush2.msra.mxu0 0.0
    %832 = vmatprep.subr.mxu0 0.0
    %833 = vmatpush2.msra.mxu0 0.0
    %834 = vmatprep.subr.mxu0 0.0
    %835 = vmatpush2.msra.mxu0 0.0
    %836 = vmatprep.subr.mxu0 0.0
    %837 = vmatpush2.msra.mxu0 0.0
    %838 = vmatprep.subr.mxu0 0.0
    %839 = vmatpush2.msra.mxu0 0.0
    %840 = vmatprep.subr.mxu0 0.0
    %841 = vmatpush2.msra.mxu0 0.0
    %842 = vmatprep.subr.mxu0 0.0
    %843 = vmatpush2.msra.mxu0 0.0
    %844 = vmatprep.subr.mxu0 0.0
    %845 = vmatpush2.msra.mxu0 0.0
    %846 = vmatprep.subr.mxu0 0.0
    %847 = vmatpush2.msra.mxu0 0.0
    %848 = vmatprep.subr.mxu0 0.0
    %849 = vmatpush2.msra.mxu0 0.0
    %850 = vmatprep.subr.mxu0 0.0
    %851 = vmatpush2.msra.mxu0 0.0
    %852 = vmatprep.subr.mxu0 0.0
    %853 = vmatpush2.msra.mxu0 0.0
    %854 = vmatprep.subr.mxu0 0.0
    %855 = vmatpush2.msra.mxu0 0.0
    %856 = vmatprep.subr.mxu0 0.0
    %857 = vmatpush2.msra.mxu0 0.0
    %858 = vmatprep.subr.mxu0 0.0
    %859 = vmatpush2.msra.mxu0 0.0
    %860 = vmatprep.subr.mxu0 0.0
    %861 = vmatpush2.msra.mxu0 0.0
    %862 = vmatprep.mubr.f32.mxu0 0.0
    %863 = vmatmul.mubr.f32.gmra.mxu0 %v796
    %v864 = vpop.f32.mrf.mxu0
    %v865 = vadd.f32 %v792, %v864
    %v866 = vpop.f32.mrf.mxu0
    %867 = vdwg.mxu0
    %v868 = vadd.f32 %v865, %v424
    %v869 = vtanh.pop %v868
    %s870 = scalar_lea.vmem [#allocation2], 16
    %871 = vst.msk [vmem:[%s870] sm:$0xff] %vm202, %v869
    %872 = vmatprep.subr.mxu0 0.0
    %873 = vmatpush1.msra.mxu0 0.0
    %874 = vmatprep.subr.mxu0 0.0
    %875 = vmatpush1.msra.mxu0 0.0
    %876 = vmatprep.subr.mxu0 0.0
    %877 = vmatpush1.msra.mxu0 0.0
    %878 = vmatprep.subr.mxu0 0.0
    %879 = vmatpush1.msra.mxu0 0.0
    %880 = vmatprep.subr.mxu0 0.0
    %881 = vmatpush1.msra.mxu0 0.0
    %882 = vmatprep.subr.mxu0 0.0
    %883 = vmatpush1.msra.mxu0 0.0
    %884 = vmatprep.subr.mxu0 0.0
    %885 = vmatpush1.msra.mxu0 0.0
    %886 = vmatprep.subr.mxu0 0.0
    %887 = vmatpush1.msra.mxu0 0.0
    %888 = vmatprep.subr.mxu0 0.0
    %889 = vmatpush1.msra.mxu0 0.0
    %890 = vmatprep.subr.mxu0 0.0
    %891 = vmatpush1.msra.mxu0 0.0
    %892 = vmatprep.subr.mxu0 0.0
    %893 = vmatpush1.msra.mxu0 0.0
    %894 = vmatprep.subr.mxu0 0.0
    %895 = vmatpush1.msra.mxu0 0.0
    %896 = vmatprep.subr.mxu0 0.0
    %897 = vmatpush1.msra.mxu0 %v48
    %898 = vmatprep.subr.mxu0 0.0
    %899 = vmatpush1.msra.mxu0 %v47
    %900 = vmatprep.subr.mxu0 0.0
    %901 = vmatpush1.msra.mxu0 %v46
    %902 = vmatprep.subr.mxu0 0.0
    %903 = vmatpush1.msra.mxu0 %v45
    %904 = vmatprep.subr.mxu0 0.0
    %905 = vmatpush2.msra.mxu0 0.0
    %906 = vmatprep.subr.mxu0 0.0
    %907 = vmatpush2.msra.mxu0 0.0
    %908 = vmatprep.subr.mxu0 0.0
    %909 = vmatpush2.msra.mxu0 0.0
    %910 = vmatprep.subr.mxu0 0.0
    %911 = vmatpush2.msra.mxu0 0.0
    %912 = vmatprep.subr.mxu0 0.0
    %913 = vmatpush2.msra.mxu0 0.0
    %914 = vmatprep.subr.mxu0 0.0
    %915 = vmatpush2.msra.mxu0 0.0
    %916 = vmatprep.subr.mxu0 0.0
    %917 = vmatpush2.msra.mxu0 0.0
    %918 = vmatprep.subr.mxu0 0.0
    %919 = vmatpush2.msra.mxu0 0.0
    %920 = vmatprep.subr.mxu0 0.0
    %921 = vmatpush2.msra.mxu0 0.0
    %922 = vmatprep.subr.mxu0 0.0
    %923 = vmatpush2.msra.mxu0 0.0
    %924 = vmatprep.subr.mxu0 0.0
    %925 = vmatpush2.msra.mxu0 0.0
    %926 = vmatprep.subr.mxu0 0.0
    %927 = vmatpush2.msra.mxu0 0.0
    %928 = vmatprep.subr.mxu0 0.0
    %929 = vmatpush2.msra.mxu0 0.0
    %930 = vmatprep.subr.mxu0 0.0
    %931 = vmatpush2.msra.mxu0 0.0
    %932 = vmatprep.subr.mxu0 0.0
    %933 = vmatpush2.msra.mxu0 0.0
    %934 = vmatprep.subr.mxu0 0.0
    %935 = vmatpush2.msra.mxu0 0.0
    %936 = vmatprep.mubr.f32.mxu0 0.0
    %937 = vmatmul.mubr.f32.gmra.mxu0 %v796
    %v938 = vpop.f32.mrf.mxu0
    %v939 = vadd.f32 0.0, %v938
    %v940 = vpop.f32.mrf.mxu0
    %941 = vdwg.mxu0
    %v942 = vadd.f32 %v179, %v939
    %v943 = vtanh.pop %v942
    %v945 = vsel %vm202, %v869, 0
    %947 = vmatprep.subr.mxu0 0.0
    %948 = vmatpush1.msra.mxu0 0.0
    %949 = vmatprep.subr.mxu0 0.0
    %950 = vmatpush1.msra.mxu0 0.0
    %951 = vmatprep.subr.mxu0 0.0
    %952 = vmatpush1.msra.mxu0 0.0
    %953 = vmatprep.subr.mxu0 0.0
    %954 = vmatpush1.msra.mxu0 0.0
    %955 = vmatprep.subr.mxu0 0.0
    %956 = vmatpush1.msra.mxu0 0.0
    %957 = vmatprep.subr.mxu0 0.0
    %958 = vmatpush1.msra.mxu0 0.0
    %959 = vmatprep.subr.mxu0 0.0
    %960 = vmatpush1.msra.mxu0 0.0
    %961 = vmatprep.subr.mxu0 0.0
    %962 = vmatpush1.msra.mxu0 0.0
    %963 = vmatprep.subr.mxu0 0.0
    %964 = vmatpush1.msra.mxu0 0.0
    %965 = vmatprep.subr.mxu0 0.0
    %966 = vmatpush1.msra.mxu0 0.0
    %967 = vmatprep.subr.mxu0 0.0
    %968 = vmatpush1.msra.mxu0 0.0
    %969 = vmatprep.subr.mxu0 0.0
    %970 = vmatpush1.msra.mxu0 0.0
    %971 = vmatprep.subr.mxu0 0.0
    %972 = vmatpush1.msra.mxu0 %v53
    %973 = vmatprep.subr.mxu0 0.0
    %974 = vmatpush1.msra.mxu0 %v52
    %975 = vmatprep.subr.mxu0 0.0
    %976 = vmatpush1.msra.mxu0 %v51
    %977 = vmatprep.subr.mxu0 0.0
    %978 = vmatpush1.msra.mxu0 %v50
    %979 = vmatprep.subr.mxu0 0.0
    %980 = vmatpush2.msra.mxu0 0.0
    %981 = vmatprep.subr.mxu0 0.0
    %982 = vmatpush2.msra.mxu0 0.0
    %983 = vmatprep.subr.mxu0 0.0
    %984 = vmatpush2.msra.mxu0 0.0
    %985 = vmatprep.subr.mxu0 0.0
    %986 = vmatpush2.msra.mxu0 0.0
    %987 = vmatprep.subr.mxu0 0.0
    %988 = vmatpush2.msra.mxu0 0.0
    %989 = vmatprep.subr.mxu0 0.0
    %990 = vmatpush2.msra.mxu0 0.0
    %991 = vmatprep.subr.mxu0 0.0
    %992 = vmatpush2.msra.mxu0 0.0
    %993 = vmatprep.subr.mxu0 0.0
    %994 = vmatpush2.msra.mxu0 0.0
    %995 = vmatprep.subr.mxu0 0.0
    %996 = vmatpush2.msra.mxu0 0.0
    %997 = vmatprep.subr.mxu0 0.0
    %998 = vmatpush2.msra.mxu0 0.0
    %999 = vmatprep.subr.mxu0 0.0
    %1000 = vmatpush2.msra.mxu0 0.0
    %1001 = vmatprep.subr.mxu0 0.0
    %1002 = vmatpush2.msra.mxu0 0.0
    %1003 = vmatprep.subr.mxu0 0.0
    %1004 = vmatpush2.msra.mxu0 0.0
    %1005 = vmatprep.subr.mxu0 0.0
    %1006 = vmatpush2.msra.mxu0 0.0
    %1007 = vmatprep.subr.mxu0 0.0
    %1008 = vmatpush2.msra.mxu0 0.0
    %1009 = vmatprep.subr.mxu0 0.0
    %1010 = vmatpush2.msra.mxu0 0.0
    %1011 = vmatprep.mubr.f32.mxu0 0.0
    %1012 = vmatmul.mubr.f32.gmra.mxu0 %v945
    %v1013 = vpop.f32.mrf.mxu0
    %v1014 = vadd.f32 0.0, %v1013
    %v1015 = vpop.f32.mrf.mxu0
    %1016 = vdwg.mxu0
    %v1018 = vsel %vm202, %v943, 0
    %1020 = vmatprep.subr.mxu0 0.0
    %1021 = vmatpush1.msra.mxu0 0.0
    %1022 = vmatprep.subr.mxu0 0.0
    %1023 = vmatpush1.msra.mxu0 0.0
    %1024 = vmatprep.subr.mxu0 0.0
    %1025 = vmatpush1.msra.mxu0 0.0
    %1026 = vmatprep.subr.mxu0 0.0
    %1027 = vmatpush1.msra.mxu0 0.0
    %1028 = vmatprep.subr.mxu0 0.0
    %1029 = vmatpush1.msra.mxu0 0.0
    %1030 = vmatprep.subr.mxu0 0.0
    %1031 = vmatpush1.msra.mxu0 0.0
    %1032 = vmatprep.subr.mxu0 0.0
    %1033 = vmatpush1.msra.mxu0 0.0
    %1034 = vmatprep.subr.mxu0 0.0
    %1035 = vmatpush1.msra.mxu0 0.0
    %1036 = vmatprep.subr.mxu0 0.0
    %1037 = vmatpush1.msra.mxu0 0.0
    %1038 = vmatprep.subr.mxu0 0.0
    %1039 = vmatpush1.msra.mxu0 0.0
    %1040 = vmatprep.subr.mxu0 0.0
    %1041 = vmatpush1.msra.mxu0 0.0
    %1042 = vmatprep.subr.mxu0 0.0
    %1043 = vmatpush1.msra.mxu0 0.0
    %1044 = vmatprep.subr.mxu0 0.0
    %1045 = vmatpush1.msra.mxu0 %v57
    %1046 = vmatprep.subr.mxu0 0.0
    %1047 = vmatpush1.msra.mxu0 %v56
    %1048 = vmatprep.subr.mxu0 0.0
    %1049 = vmatpush1.msra.mxu0 %v55
    %1050 = vmatprep.subr.mxu0 0.0
    %1051 = vmatpush1.msra.mxu0 %v54
    %1052 = vmatprep.subr.mxu0 0.0
    %1053 = vmatpush2.msra.mxu0 0.0
    %1054 = vmatprep.subr.mxu0 0.0
    %1055 = vmatpush2.msra.mxu0 0.0
    %1056 = vmatprep.subr.mxu0 0.0
    %1057 = vmatpush2.msra.mxu0 0.0
    %1058 = vmatprep.subr.mxu0 0.0
    %1059 = vmatpush2.msra.mxu0 0.0
    %1060 = vmatprep.subr.mxu0 0.0
    %1061 = vmatpush2.msra.mxu0 0.0
    %1062 = vmatprep.subr.mxu0 0.0
    %1063 = vmatpush2.msra.mxu0 0.0
    %1064 = vmatprep.subr.mxu0 0.0
    %1065 = vmatpush2.msra.mxu0 0.0
    %1066 = vmatprep.subr.mxu0 0.0
    %1067 = vmatpush2.msra.mxu0 0.0
    %1068 = vmatprep.subr.mxu0 0.0
    %1069 = vmatpush2.msra.mxu0 0.0
    %1070 = vmatprep.subr.mxu0 0.0
    %1071 = vmatpush2.msra.mxu0 0.0
    %1072 = vmatprep.subr.mxu0 0.0
    %1073 = vmatpush2.msra.mxu0 0.0
    %1074 = vmatprep.subr.mxu0 0.0
    %1075 = vmatpush2.msra.mxu0 0.0
    %1076 = vmatprep.subr.mxu0 0.0
    %1077 = vmatpush2.msra.mxu0 0.0
    %1078 = vmatprep.subr.mxu0 0.0
    %1079 = vmatpush2.msra.mxu0 0.0
    %1080 = vmatprep.subr.mxu0 0.0
    %1081 = vmatpush2.msra.mxu0 0.0
    %1082 = vmatprep.subr.mxu0 0.0
    %1083 = vmatpush2.msra.mxu0 0.0
    %1084 = vmatprep.mubr.f32.mxu0 0.0
    %1085 = vmatmul.mubr.f32.gmra.mxu0 %v1018
    %v1086 = vpop.f32.mrf.mxu0
    %v1087 = vadd.f32 %v1014, %v1086
    %v1088 = vpop.f32.mrf.mxu0
    %1089 = vdwg.mxu0
    %v1090 = vadd.f32 %v1087, %v424
    %v1091 = vtanh.pop %v1090
    %s1092 = scalar_lea.vmem [#allocation2], 24
    %1093 = vst.msk [vmem:[%s1092] sm:$0xff] %vm202, %v1091
    %1094 = vmatprep.subr.mxu0 0.0
    %1095 = vmatpush1.msra.mxu0 0.0
    %1096 = vmatprep.subr.mxu0 0.0
    %1097 = vmatpush1.msra.mxu0 0.0
    %1098 = vmatprep.subr.mxu0 0.0
    %1099 = vmatpush1.msra.mxu0 0.0
    %1100 = vmatprep.subr.mxu0 0.0
    %1101 = vmatpush1.msra.mxu0 0.0
    %1102 = vmatprep.subr.mxu0 0.0
    %1103 = vmatpush1.msra.mxu0 0.0
    %1104 = vmatprep.subr.mxu0 0.0
    %1105 = vmatpush1.msra.mxu0 0.0
    %1106 = vmatprep.subr.mxu0 0.0
    %1107 = vmatpush1.msra.mxu0 0.0
    %1108 = vmatprep.subr.mxu0 0.0
    %1109 = vmatpush1.msra.mxu0 0.0
    %1110 = vmatprep.subr.mxu0 0.0
    %1111 = vmatpush1.msra.mxu0 0.0
    %1112 = vmatprep.subr.mxu0 0.0
    %1113 = vmatpush1.msra.mxu0 0.0
    %1114 = vmatprep.subr.mxu0 0.0
    %1115 = vmatpush1.msra.mxu0 0.0
    %1116 = vmatprep.subr.mxu0 0.0
    %1117 = vmatpush1.msra.mxu0 0.0
    %1118 = vmatprep.subr.mxu0 0.0
    %1119 = vmatpush1.msra.mxu0 %v48
    %1120 = vmatprep.subr.mxu0 0.0
    %1121 = vmatpush1.msra.mxu0 %v47
    %1122 = vmatprep.subr.mxu0 0.0
    %1123 = vmatpush1.msra.mxu0 %v46
    %1124 = vmatprep.subr.mxu0 0.0
    %1125 = vmatpush1.msra.mxu0 %v45
    %1126 = vmatprep.subr.mxu0 0.0
    %1127 = vmatpush2.msra.mxu0 0.0
    %1128 = vmatprep.subr.mxu0 0.0
    %1129 = vmatpush2.msra.mxu0 0.0
    %1130 = vmatprep.subr.mxu0 0.0
    %1131 = vmatpush2.msra.mxu0 0.0
    %1132 = vmatprep.subr.mxu0 0.0
    %1133 = vmatpush2.msra.mxu0 0.0
    %1134 = vmatprep.subr.mxu0 0.0
    %1135 = vmatpush2.msra.mxu0 0.0
    %1136 = vmatprep.subr.mxu0 0.0
    %1137 = vmatpush2.msra.mxu0 0.0
    %1138 = vmatprep.subr.mxu0 0.0
    %1139 = vmatpush2.msra.mxu0 0.0
    %1140 = vmatprep.subr.mxu0 0.0
    %1141 = vmatpush2.msra.mxu0 0.0
    %1142 = vmatprep.subr.mxu0 0.0
    %1143 = vmatpush2.msra.mxu0 0.0
    %1144 = vmatprep.subr.mxu0 0.0
    %1145 = vmatpush2.msra.mxu0 0.0
    %1146 = vmatprep.subr.mxu0 0.0
    %1147 = vmatpush2.msra.mxu0 0.0
    %1148 = vmatprep.subr.mxu0 0.0
    %1149 = vmatpush2.msra.mxu0 0.0
    %1150 = vmatprep.subr.mxu0 0.0
    %1151 = vmatpush2.msra.mxu0 0.0
    %1152 = vmatprep.subr.mxu0 0.0
    %1153 = vmatpush2.msra.mxu0 0.0
    %1154 = vmatprep.subr.mxu0 0.0
    %1155 = vmatpush2.msra.mxu0 0.0
    %1156 = vmatprep.subr.mxu0 0.0
    %1157 = vmatpush2.msra.mxu0 0.0
    %1158 = vmatprep.mubr.f32.mxu0 0.0
    %1159 = vmatmul.mubr.f32.gmra.mxu0 %v1018
    %v1160 = vpop.f32.mrf.mxu0
    %v1161 = vadd.f32 0.0, %v1160
    %v1162 = vpop.f32.mrf.mxu0
    %1163 = vdwg.mxu0
    %v1164 = vadd.f32 %v184, %v1161
    %v1165 = vtanh.pop %v1164
    %v1167 = vsel %vm202, %v1091, 0
    %1169 = vmatprep.subr.mxu0 0.0
    %1170 = vmatpush1.msra.mxu0 0.0
    %1171 = vmatprep.subr.mxu0 0.0
    %1172 = vmatpush1.msra.mxu0 0.0
    %1173 = vmatprep.subr.mxu0 0.0
    %1174 = vmatpush1.msra.mxu0 0.0
    %1175 = vmatprep.subr.mxu0 0.0
    %1176 = vmatpush1.msra.mxu0 0.0
    %1177 = vmatprep.subr.mxu0 0.0
    %1178 = vmatpush1.msra.mxu0 0.0
    %1179 = vmatprep.subr.mxu0 0.0
    %1180 = vmatpush1.msra.mxu0 0.0
    %1181 = vmatprep.subr.mxu0 0.0
    %1182 = vmatpush1.msra.mxu0 0.0
    %1183 = vmatprep.subr.mxu0 0.0
    %1184 = vmatpush1.msra.mxu0 0.0
    %1185 = vmatprep.subr.mxu0 0.0
    %1186 = vmatpush1.msra.mxu0 0.0
    %1187 = vmatprep.subr.mxu0 0.0
    %1188 = vmatpush1.msra.mxu0 0.0
    %1189 = vmatprep.subr.mxu0 0.0
    %1190 = vmatpush1.msra.mxu0 0.0
    %1191 = vmatprep.subr.mxu0 0.0
    %1192 = vmatpush1.msra.mxu0 0.0
    %1193 = vmatprep.subr.mxu0 0.0
    %1194 = vmatpush1.msra.mxu0 %v53
    %1195 = vmatprep.subr.mxu0 0.0
    %1196 = vmatpush1.msra.mxu0 %v52
    %1197 = vmatprep.subr.mxu0 0.0
    %1198 = vmatpush1.msra.mxu0 %v51
    %1199 = vmatprep.subr.mxu0 0.0
    %1200 = vmatpush1.msra.mxu0 %v50
    %1201 = vmatprep.subr.mxu0 0.0
    %1202 = vmatpush2.msra.mxu0 0.0
    %1203 = vmatprep.subr.mxu0 0.0
    %1204 = vmatpush2.msra.mxu0 0.0
    %1205 = vmatprep.subr.mxu0 0.0
    %1206 = vmatpush2.msra.mxu0 0.0
    %1207 = vmatprep.subr.mxu0 0.0
    %1208 = vmatpush2.msra.mxu0 0.0
    %1209 = vmatprep.subr.mxu0 0.0
    %1210 = vmatpush2.msra.mxu0 0.0
    %1211 = vmatprep.subr.mxu0 0.0
    %1212 = vmatpush2.msra.mxu0 0.0
    %1213 = vmatprep.subr.mxu0 0.0
    %1214 = vmatpush2.msra.mxu0 0.0
    %1215 = vmatprep.subr.mxu0 0.0
    %1216 = vmatpush2.msra.mxu0 0.0
    %1217 = vmatprep.subr.mxu0 0.0
    %1218 = vmatpush2.msra.mxu0 0.0
    %1219 = vmatprep.subr.mxu0 0.0
    %1220 = vmatpush2.msra.mxu0 0.0
    %1221 = vmatprep.subr.mxu0 0.0
    %1222 = vmatpush2.msra.mxu0 0.0
    %1223 = vmatprep.subr.mxu0 0.0
    %1224 = vmatpush2.msra.mxu0 0.0
    %1225 = vmatprep.subr.mxu0 0.0
    %1226 = vmatpush2.msra.mxu0 0.0
    %1227 = vmatprep.subr.mxu0 0.0
    %1228 = vmatpush2.msra.mxu0 0.0
    %1229 = vmatprep.subr.mxu0 0.0
    %1230 = vmatpush2.msra.mxu0 0.0
    %1231 = vmatprep.subr.mxu0 0.0
    %1232 = vmatpush2.msra.mxu0 0.0
    %1233 = vmatprep.mubr.f32.mxu0 0.0
    %1234 = vmatmul.mubr.f32.gmra.mxu0 %v1167
    %v1235 = vpop.f32.mrf.mxu0
    %v1236 = vadd.f32 0.0, %v1235
    %v1237 = vpop.f32.mrf.mxu0
    %1238 = vdwg.mxu0
    %v1240 = vsel %vm202, %v1165, 0
    %1242 = vmatprep.subr.mxu0 0.0
    %1243 = vmatpush1.msra.mxu0 0.0
    %1244 = vmatprep.subr.mxu0 0.0
    %1245 = vmatpush1.msra.mxu0 0.0
    %1246 = vmatprep.subr.mxu0 0.0
    %1247 = vmatpush1.msra.mxu0 0.0
    %1248 = vmatprep.subr.mxu0 0.0
    %1249 = vmatpush1.msra.mxu0 0.0
    %1250 = vmatprep.subr.mxu0 0.0
    %1251 = vmatpush1.msra.mxu0 0.0
    %1252 = vmatprep.subr.mxu0 0.0
    %1253 = vmatpush1.msra.mxu0 0.0
    %1254 = vmatprep.subr.mxu0 0.0
    %1255 = vmatpush1.msra.mxu0 0.0
    %1256 = vmatprep.subr.mxu0 0.0
    %1257 = vmatpush1.msra.mxu0 0.0
    %1258 = vmatprep.subr.mxu0 0.0
    %1259 = vmatpush1.msra.mxu0 0.0
    %1260 = vmatprep.subr.mxu0 0.0
    %1261 = vmatpush1.msra.mxu0 0.0
    %1262 = vmatprep.subr.mxu0 0.0
    %1263 = vmatpush1.msra.mxu0 0.0
    %1264 = vmatprep.subr.mxu0 0.0
    %1265 = vmatpush1.msra.mxu0 0.0
    %1266 = vmatprep.subr.mxu0 0.0
    %1267 = vmatpush1.msra.mxu0 %v57
    %1268 = vmatprep.subr.mxu0 0.0
    %1269 = vmatpush1.msra.mxu0 %v56
    %1270 = vmatprep.subr.mxu0 0.0
    %1271 = vmatpush1.msra.mxu0 %v55
    %1272 = vmatprep.subr.mxu0 0.0
    %1273 = vmatpush1.msra.mxu0 %v54
    %1274 = vmatprep.subr.mxu0 0.0
    %1275 = vmatpush2.msra.mxu0 0.0
    %1276 = vmatprep.subr.mxu0 0.0
    %1277 = vmatpush2.msra.mxu0 0.0
    %1278 = vmatprep.subr.mxu0 0.0
    %1279 = vmatpush2.msra.mxu0 0.0
    %1280 = vmatprep.subr.mxu0 0.0
    %1281 = vmatpush2.msra.mxu0 0.0
    %1282 = vmatprep.subr.mxu0 0.0
    %1283 = vmatpush2.msra.mxu0 0.0
    %1284 = vmatprep.subr.mxu0 0.0
    %1285 = vmatpush2.msra.mxu0 0.0
    %1286 = vmatprep.subr.mxu0 0.0
    %1287 = vmatpush2.msra.mxu0 0.0
    %1288 = vmatprep.subr.mxu0 0.0
    %1289 = vmatpush2.msra.mxu0 0.0
    %1290 = vmatprep.subr.mxu0 0.0
    %1291 = vmatpush2.msra.mxu0 0.0
    %1292 = vmatprep.subr.mxu0 0.0
    %1293 = vmatpush2.msra.mxu0 0.0
    %1294 = vmatprep.subr.mxu0 0.0
    %1295 = vmatpush2.msra.mxu0 0.0
    %1296 = vmatprep.subr.mxu0 0.0
    %1297 = vmatpush2.msra.mxu0 0.0
    %1298 = vmatprep.subr.mxu0 0.0
    %1299 = vmatpush2.msra.mxu0 0.0
    %1300 = vmatprep.subr.mxu0 0.0
    %1301 = vmatpush2.msra.mxu0 0.0
    %1302 = vmatprep.subr.mxu0 0.0
    %1303 = vmatpush2.msra.mxu0 0.0
    %1304 = vmatprep.subr.mxu0 0.0
    %1305 = vmatpush2.msra.mxu0 0.0
    %1306 = vmatprep.mubr.f32.mxu0 0.0
    %1307 = vmatmul.mubr.f32.gmra.mxu0 %v1240
    %v1308 = vpop.f32.mrf.mxu0
    %v1309 = vadd.f32 %v1236, %v1308
    %v1310 = vpop.f32.mrf.mxu0
    %1311 = vdwg.mxu0
    %v1312 = vadd.f32 %v1309, %v424
    %v1313 = vtanh.pop %v1312
    %s1314 = scalar_lea.vmem [#allocation2], 32
    %1315 = vst.msk [vmem:[%s1314] sm:$0xff] %vm202, %v1313
    %1316 = vmatprep.subr.mxu0 0.0
    %1317 = vmatpush1.msra.mxu0 0.0
    %1318 = vmatprep.subr.mxu0 0.0
    %1319 = vmatpush1.msra.mxu0 0.0
    %1320 = vmatprep.subr.mxu0 0.0
    %1321 = vmatpush1.msra.mxu0 0.0
    %1322 = vmatprep.subr.mxu0 0.0
    %1323 = vmatpush1.msra.mxu0 0.0
    %1324 = vmatprep.subr.mxu0 0.0
    %1325 = vmatpush1.msra.mxu0 0.0
    %1326 = vmatprep.subr.mxu0 0.0
    %1327 = vmatpush1.msra.mxu0 0.0
    %1328 = vmatprep.subr.mxu0 0.0
    %1329 = vmatpush1.msra.mxu0 0.0
    %1330 = vmatprep.subr.mxu0 0.0
    %1331 = vmatpush1.msra.mxu0 0.0
    %1332 = vmatprep.subr.mxu0 0.0
    %1333 = vmatpush1.msra.mxu0 0.0
    %1334 = vmatprep.subr.mxu0 0.0
    %1335 = vmatpush1.msra.mxu0 0.0
    %1336 = vmatprep.subr.mxu0 0.0
    %1337 = vmatpush1.msra.mxu0 0.0
    %1338 = vmatprep.subr.mxu0 0.0
    %1339 = vmatpush1.msra.mxu0 0.0
    %1340 = vmatprep.subr.mxu0 0.0
    %1341 = vmatpush1.msra.mxu0 %v48
    %1342 = vmatprep.subr.mxu0 0.0
    %1343 = vmatpush1.msra.mxu0 %v47
    %1344 = vmatprep.subr.mxu0 0.0
    %1345 = vmatpush1.msra.mxu0 %v46
    %1346 = vmatprep.subr.mxu0 0.0
    %1347 = vmatpush1.msra.mxu0 %v45
    %1348 = vmatprep.subr.mxu0 0.0
    %1349 = vmatpush2.msra.mxu0 0.0
    %1350 = vmatprep.subr.mxu0 0.0
    %1351 = vmatpush2.msra.mxu0 0.0
    %1352 = vmatprep.subr.mxu0 0.0
    %1353 = vmatpush2.msra.mxu0 0.0
    %1354 = vmatprep.subr.mxu0 0.0
    %1355 = vmatpush2.msra.mxu0 0.0
    %1356 = vmatprep.subr.mxu0 0.0
    %1357 = vmatpush2.msra.mxu0 0.0
    %1358 = vmatprep.subr.mxu0 0.0
    %1359 = vmatpush2.msra.mxu0 0.0
    %1360 = vmatprep.subr.mxu0 0.0
    %1361 = vmatpush2.msra.mxu0 0.0
    %1362 = vmatprep.subr.mxu0 0.0
    %1363 = vmatpush2.msra.mxu0 0.0
    %1364 = vmatprep.subr.mxu0 0.0
    %1365 = vmatpush2.msra.mxu0 0.0
    %1366 = vmatprep.subr.mxu0 0.0
    %1367 = vmatpush2.msra.mxu0 0.0
    %1368 = vmatprep.subr.mxu0 0.0
    %1369 = vmatpush2.msra.mxu0 0.0
    %1370 = vmatprep.subr.mxu0 0.0
    %1371 = vmatpush2.msra.mxu0 0.0
    %1372 = vmatprep.subr.mxu0 0.0
    %1373 = vmatpush2.msra.mxu0 0.0
    %1374 = vmatprep.subr.mxu0 0.0
    %1375 = vmatpush2.msra.mxu0 0.0
    %1376 = vmatprep.subr.mxu0 0.0
    %1377 = vmatpush2.msra.mxu0 0.0
    %1378 = vmatprep.subr.mxu0 0.0
    %1379 = vmatpush2.msra.mxu0 0.0
    %1380 = vmatprep.mubr.f32.mxu0 0.0
    %1381 = vmatmul.mubr.f32.gmra.mxu0 %v1240
    %v1382 = vpop.f32.mrf.mxu0
    %v1383 = vadd.f32 0.0, %v1382
    %v1384 = vpop.f32.mrf.mxu0
    %1385 = vdwg.mxu0
    %v1386 = vadd.f32 %v189, %v1383
    %v1387 = vtanh.pop %v1386
    %v1389 = vsel %vm202, %v1313, 0
    %1391 = vmatprep.subr.mxu0 0.0
    %1392 = vmatpush1.msra.mxu0 0.0
    %1393 = vmatprep.subr.mxu0 0.0
    %1394 = vmatpush1.msra.mxu0 0.0
    %1395 = vmatprep.subr.mxu0 0.0
    %1396 = vmatpush1.msra.mxu0 0.0
    %1397 = vmatprep.subr.mxu0 0.0
    %1398 = vmatpush1.msra.mxu0 0.0
    %1399 = vmatprep.subr.mxu0 0.0
    %1400 = vmatpush1.msra.mxu0 0.0
    %1401 = vmatprep.subr.mxu0 0.0
    %1402 = vmatpush1.msra.mxu0 0.0
    %1403 = vmatprep.subr.mxu0 0.0
    %1404 = vmatpush1.msra.mxu0 0.0
    %1405 = vmatprep.subr.mxu0 0.0
    %1406 = vmatpush1.msra.mxu0 0.0
    %1407 = vmatprep.subr.mxu0 0.0
    %1408 = vmatpush1.msra.mxu0 0.0
    %1409 = vmatprep.subr.mxu0 0.0
    %1410 = vmatpush1.msra.mxu0 0.0
    %1411 = vmatprep.subr.mxu0 0.0
    %1412 = vmatpush1.msra.mxu0 0.0
    %1413 = vmatprep.subr.mxu0 0.0
    %1414 = vmatpush1.msra.mxu0 0.0
    %1415 = vmatprep.subr.mxu0 0.0
    %1416 = vmatpush1.msra.mxu0 %v53
    %1417 = vmatprep.subr.mxu0 0.0
    %1418 = vmatpush1.msra.mxu0 %v52
    %1419 = vmatprep.subr.mxu0 0.0
    %1420 = vmatpush1.msra.mxu0 %v51
    %1421 = vmatprep.subr.mxu0 0.0
    %1422 = vmatpush1.msra.mxu0 %v50
    %1423 = vmatprep.subr.mxu0 0.0
    %1424 = vmatpush2.msra.mxu0 0.0
    %1425 = vmatprep.subr.mxu0 0.0
    %1426 = vmatpush2.msra.mxu0 0.0
    %1427 = vmatprep.subr.mxu0 0.0
    %1428 = vmatpush2.msra.mxu0 0.0
    %1429 = vmatprep.subr.mxu0 0.0
    %1430 = vmatpush2.msra.mxu0 0.0
    %1431 = vmatprep.subr.mxu0 0.0
    %1432 = vmatpush2.msra.mxu0 0.0
    %1433 = vmatprep.subr.mxu0 0.0
    %1434 = vmatpush2.msra.mxu0 0.0
    %1435 = vmatprep.subr.mxu0 0.0
    %1436 = vmatpush2.msra.mxu0 0.0
    %1437 = vmatprep.subr.mxu0 0.0
    %1438 = vmatpush2.msra.mxu0 0.0
    %1439 = vmatprep.subr.mxu0 0.0
    %1440 = vmatpush2.msra.mxu0 0.0
    %1441 = vmatprep.subr.mxu0 0.0
    %1442 = vmatpush2.msra.mxu0 0.0
    %1443 = vmatprep.subr.mxu0 0.0
    %1444 = vmatpush2.msra.mxu0 0.0
    %1445 = vmatprep.subr.mxu0 0.0
    %1446 = vmatpush2.msra.mxu0 0.0
    %1447 = vmatprep.subr.mxu0 0.0
    %1448 = vmatpush2.msra.mxu0 0.0
    %1449 = vmatprep.subr.mxu0 0.0
    %1450 = vmatpush2.msra.mxu0 0.0
    %1451 = vmatprep.subr.mxu0 0.0
    %1452 = vmatpush2.msra.mxu0 0.0
    %1453 = vmatprep.subr.mxu0 0.0
    %1454 = vmatpush2.msra.mxu0 0.0
    %1455 = vmatprep.mubr.f32.mxu0 0.0
    %1456 = vmatmul.mubr.f32.gmra.mxu0 %v1389
    %v1457 = vpop.f32.mrf.mxu0
    %v1458 = vadd.f32 0.0, %v1457
    %v1459 = vpop.f32.mrf.mxu0
    %1460 = vdwg.mxu0
    %v1462 = vsel %vm202, %v1387, 0
    %1464 = vmatprep.subr.mxu0 0.0
    %1465 = vmatpush1.msra.mxu0 0.0
    %1466 = vmatprep.subr.mxu0 0.0
    %1467 = vmatpush1.msra.mxu0 0.0
    %1468 = vmatprep.subr.mxu0 0.0
    %1469 = vmatpush1.msra.mxu0 0.0
    %1470 = vmatprep.subr.mxu0 0.0
    %1471 = vmatpush1.msra.mxu0 0.0
    %1472 = vmatprep.subr.mxu0 0.0
    %1473 = vmatpush1.msra.mxu0 0.0
    %1474 = vmatprep.subr.mxu0 0.0
    %1475 = vmatpush1.msra.mxu0 0.0
    %1476 = vmatprep.subr.mxu0 0.0
    %1477 = vmatpush1.msra.mxu0 0.0
    %1478 = vmatprep.subr.mxu0 0.0
    %1479 = vmatpush1.msra.mxu0 0.0
    %1480 = vmatprep.subr.mxu0 0.0
    %1481 = vmatpush1.msra.mxu0 0.0
    %1482 = vmatprep.subr.mxu0 0.0
    %1483 = vmatpush1.msra.mxu0 0.0
    %1484 = vmatprep.subr.mxu0 0.0
    %1485 = vmatpush1.msra.mxu0 0.0
    %1486 = vmatprep.subr.mxu0 0.0
    %1487 = vmatpush1.msra.mxu0 0.0
    %1488 = vmatprep.subr.mxu0 0.0
    %1489 = vmatpush1.msra.mxu0 %v57
    %1490 = vmatprep.subr.mxu0 0.0
    %1491 = vmatpush1.msra.mxu0 %v56
    %1492 = vmatprep.subr.mxu0 0.0
    %1493 = vmatpush1.msra.mxu0 %v55
    %1494 = vmatprep.subr.mxu0 0.0
    %1495 = vmatpush1.msra.mxu0 %v54
    %1496 = vmatprep.subr.mxu0 0.0
    %1497 = vmatpush2.msra.mxu0 0.0
    %1498 = vmatprep.subr.mxu0 0.0
    %1499 = vmatpush2.msra.mxu0 0.0
    %1500 = vmatprep.subr.mxu0 0.0
    %1501 = vmatpush2.msra.mxu0 0.0
    %1502 = vmatprep.subr.mxu0 0.0
    %1503 = vmatpush2.msra.mxu0 0.0
    %1504 = vmatprep.subr.mxu0 0.0
    %1505 = vmatpush2.msra.mxu0 0.0
    %1506 = vmatprep.subr.mxu0 0.0
    %1507 = vmatpush2.msra.mxu0 0.0
    %1508 = vmatprep.subr.mxu0 0.0
    %1509 = vmatpush2.msra.mxu0 0.0
    %1510 = vmatprep.subr.mxu0 0.0
    %1511 = vmatpush2.msra.mxu0 0.0
    %1512 = vmatprep.subr.mxu0 0.0
    %1513 = vmatpush2.msra.mxu0 0.0
    %1514 = vmatprep.subr.mxu0 0.0
    %1515 = vmatpush2.msra.mxu0 0.0
    %1516 = vmatprep.subr.mxu0 0.0
    %1517 = vmatpush2.msra.mxu0 0.0
    %1518 = vmatprep.subr.mxu0 0.0
    %1519 = vmatpush2.msra.mxu0 0.0
    %1520 = vmatprep.subr.mxu0 0.0
    %1521 = vmatpush2.msra.mxu0 0.0
    %1522 = vmatprep.subr.mxu0 0.0
    %1523 = vmatpush2.msra.mxu0 0.0
    %1524 = vmatprep.subr.mxu0 0.0
    %1525 = vmatpush2.msra.mxu0 0.0
    %1526 = vmatprep.subr.mxu0 0.0
    %1527 = vmatpush2.msra.mxu0 0.0
    %1528 = vmatprep.mubr.f32.mxu0 0.0
    %1529 = vmatmul.mubr.f32.gmra.mxu0 %v1462
    %v1530 = vpop.f32.mrf.mxu0
    %v1531 = vadd.f32 %v1458, %v1530
    %v1532 = vpop.f32.mrf.mxu0
    %1533 = vdwg.mxu0
    %v1534 = vadd.f32 %v1531, %v424
    %v1535 = vtanh.pop %v1534
    %s1536 = scalar_lea.vmem [#allocation2], 40
    %1537 = vst.msk [vmem:[%s1536] sm:$0xff] %vm202, %v1535
    %1538 = vmatprep.subr.mxu0 0.0
    %1539 = vmatpush1.msra.mxu0 0.0
    %1540 = vmatprep.subr.mxu0 0.0
    %1541 = vmatpush1.msra.mxu0 0.0
    %1542 = vmatprep.subr.mxu0 0.0
    %1543 = vmatpush1.msra.mxu0 0.0
    %1544 = vmatprep.subr.mxu0 0.0
    %1545 = vmatpush1.msra.mxu0 0.0
    %1546 = vmatprep.subr.mxu0 0.0
    %1547 = vmatpush1.msra.mxu0 0.0
    %1548 = vmatprep.subr.mxu0 0.0
    %1549 = vmatpush1.msra.mxu0 0.0
    %1550 = vmatprep.subr.mxu0 0.0
    %1551 = vmatpush1.msra.mxu0 0.0
    %1552 = vmatprep.subr.mxu0 0.0
    %1553 = vmatpush1.msra.mxu0 0.0
    %1554 = vmatprep.subr.mxu0 0.0
    %1555 = vmatpush1.msra.mxu0 0.0
    %1556 = vmatprep.subr.mxu0 0.0
    %1557 = vmatpush1.msra.mxu0 0.0
    %1558 = vmatprep.subr.mxu0 0.0
    %1559 = vmatpush1.msra.mxu0 0.0
    %1560 = vmatprep.subr.mxu0 0.0
    %1561 = vmatpush1.msra.mxu0 0.0
    %1562 = vmatprep.subr.mxu0 0.0
    %1563 = vmatpush1.msra.mxu0 %v48
    %1564 = vmatprep.subr.mxu0 0.0
    %1565 = vmatpush1.msra.mxu0 %v47
    %1566 = vmatprep.subr.mxu0 0.0
    %1567 = vmatpush1.msra.mxu0 %v46
    %1568 = vmatprep.subr.mxu0 0.0
    %1569 = vmatpush1.msra.mxu0 %v45
    %1570 = vmatprep.subr.mxu0 0.0
    %1571 = vmatpush2.msra.mxu0 0.0
    %1572 = vmatprep.subr.mxu0 0.0
    %1573 = vmatpush2.msra.mxu0 0.0
    %1574 = vmatprep.subr.mxu0 0.0
    %1575 = vmatpush2.msra.mxu0 0.0
    %1576 = vmatprep.subr.mxu0 0.0
    %1577 = vmatpush2.msra.mxu0 0.0
    %1578 = vmatprep.subr.mxu0 0.0
    %1579 = vmatpush2.msra.mxu0 0.0
    %1580 = vmatprep.subr.mxu0 0.0
    %1581 = vmatpush2.msra.mxu0 0.0
    %1582 = vmatprep.subr.mxu0 0.0
    %1583 = vmatpush2.msra.mxu0 0.0
    %1584 = vmatprep.subr.mxu0 0.0
    %1585 = vmatpush2.msra.mxu0 0.0
    %1586 = vmatprep.subr.mxu0 0.0
    %1587 = vmatpush2.msra.mxu0 0.0
    %1588 = vmatprep.subr.mxu0 0.0
    %1589 = vmatpush2.msra.mxu0 0.0
    %1590 = vmatprep.subr.mxu0 0.0
    %1591 = vmatpush2.msra.mxu0 0.0
    %1592 = vmatprep.subr.mxu0 0.0
    %1593 = vmatpush2.msra.mxu0 0.0
    %1594 = vmatprep.subr.mxu0 0.0
    %1595 = vmatpush2.msra.mxu0 0.0
    %1596 = vmatprep.subr.mxu0 0.0
    %1597 = vmatpush2.msra.mxu0 0.0
    %1598 = vmatprep.subr.mxu0 0.0
    %1599 = vmatpush2.msra.mxu0 0.0
    %1600 = vmatprep.subr.mxu0 0.0
    %1601 = vmatpush2.msra.mxu0 0.0
    %1602 = vmatprep.mubr.f32.mxu0 0.0
    %1603 = vmatmul.mubr.f32.gmra.mxu0 %v1462
    %v1604 = vpop.f32.mrf.mxu0
    %v1605 = vadd.f32 0.0, %v1604
    %v1606 = vpop.f32.mrf.mxu0
    %1607 = vdwg.mxu0
    %v1608 = vadd.f32 %v194, %v1605
    %v1609 = vtanh.pop %v1608
    %v1611 = vsel %vm202, %v1535, 0
    %1613 = vmatprep.subr.mxu0 0.0
    %1614 = vmatpush1.msra.mxu0 0.0
    %1615 = vmatprep.subr.mxu0 0.0
    %1616 = vmatpush1.msra.mxu0 0.0
    %1617 = vmatprep.subr.mxu0 0.0
    %1618 = vmatpush1.msra.mxu0 0.0
    %1619 = vmatprep.subr.mxu0 0.0
    %1620 = vmatpush1.msra.mxu0 0.0
    %1621 = vmatprep.subr.mxu0 0.0
    %1622 = vmatpush1.msra.mxu0 0.0
    %1623 = vmatprep.subr.mxu0 0.0
    %1624 = vmatpush1.msra.mxu0 0.0
    %1625 = vmatprep.subr.mxu0 0.0
    %1626 = vmatpush1.msra.mxu0 0.0
    %1627 = vmatprep.subr.mxu0 0.0
    %1628 = vmatpush1.msra.mxu0 0.0
    %1629 = vmatprep.subr.mxu0 0.0
    %1630 = vmatpush1.msra.mxu0 0.0
    %1631 = vmatprep.subr.mxu0 0.0
    %1632 = vmatpush1.msra.mxu0 0.0
    %1633 = vmatprep.subr.mxu0 0.0
    %1634 = vmatpush1.msra.mxu0 0.0
    %1635 = vmatprep.subr.mxu0 0.0
    %1636 = vmatpush1.msra.mxu0 0.0
    %1637 = vmatprep.subr.mxu0 0.0
    %1638 = vmatpush1.msra.mxu0 %v53
    %1639 = vmatprep.subr.mxu0 0.0
    %1640 = vmatpush1.msra.mxu0 %v52
    %1641 = vmatprep.subr.mxu0 0.0
    %1642 = vmatpush1.msra.mxu0 %v51
    %1643 = vmatprep.subr.mxu0 0.0
    %1644 = vmatpush1.msra.mxu0 %v50
    %1645 = vmatprep.subr.mxu0 0.0
    %1646 = vmatpush2.msra.mxu0 0.0
    %1647 = vmatprep.subr.mxu0 0.0
    %1648 = vmatpush2.msra.mxu0 0.0
    %1649 = vmatprep.subr.mxu0 0.0
    %1650 = vmatpush2.msra.mxu0 0.0
    %1651 = vmatprep.subr.mxu0 0.0
    %1652 = vmatpush2.msra.mxu0 0.0
    %1653 = vmatprep.subr.mxu0 0.0
    %1654 = vmatpush2.msra.mxu0 0.0
    %1655 = vmatprep.subr.mxu0 0.0
    %1656 = vmatpush2.msra.mxu0 0.0
    %1657 = vmatprep.subr.mxu0 0.0
    %1658 = vmatpush2.msra.mxu0 0.0
    %1659 = vmatprep.subr.mxu0 0.0
    %1660 = vmatpush2.msra.mxu0 0.0
    %1661 = vmatprep.subr.mxu0 0.0
    %1662 = vmatpush2.msra.mxu0 0.0
    %1663 = vmatprep.subr.mxu0 0.0
    %1664 = vmatpush2.msra.mxu0 0.0
    %1665 = vmatprep.subr.mxu0 0.0
    %1666 = vmatpush2.msra.mxu0 0.0
    %1667 = vmatprep.subr.mxu0 0.0
    %1668 = vmatpush2.msra.mxu0 0.0
    %1669 = vmatprep.subr.mxu0 0.0
    %1670 = vmatpush2.msra.mxu0 0.0
    %1671 = vmatprep.subr.mxu0 0.0
    %1672 = vmatpush2.msra.mxu0 0.0
    %1673 = vmatprep.subr.mxu0 0.0
    %1674 = vmatpush2.msra.mxu0 0.0
    %1675 = vmatprep.subr.mxu0 0.0
    %1676 = vmatpush2.msra.mxu0 0.0
    %1677 = vmatprep.mubr.f32.mxu0 0.0
    %1678 = vmatmul.mubr.f32.gmra.mxu0 %v1611
    %v1679 = vpop.f32.mrf.mxu0
    %v1680 = vadd.f32 0.0, %v1679
    %v1681 = vpop.f32.mrf.mxu0
    %1682 = vdwg.mxu0
    %v1684 = vsel %vm202, %v1609, 0
    %1686 = vmatprep.subr.mxu0 0.0
    %1687 = vmatpush1.msra.mxu0 0.0
    %1688 = vmatprep.subr.mxu0 0.0
    %1689 = vmatpush1.msra.mxu0 0.0
    %1690 = vmatprep.subr.mxu0 0.0
    %1691 = vmatpush1.msra.mxu0 0.0
    %1692 = vmatprep.subr.mxu0 0.0
    %1693 = vmatpush1.msra.mxu0 0.0
    %1694 = vmatprep.subr.mxu0 0.0
    %1695 = vmatpush1.msra.mxu0 0.0
    %1696 = vmatprep.subr.mxu0 0.0
    %1697 = vmatpush1.msra.mxu0 0.0
    %1698 = vmatprep.subr.mxu0 0.0
    %1699 = vmatpush1.msra.mxu0 0.0
    %1700 = vmatprep.subr.mxu0 0.0
    %1701 = vmatpush1.msra.mxu0 0.0
    %1702 = vmatprep.subr.mxu0 0.0
    %1703 = vmatpush1.msra.mxu0 0.0
    %1704 = vmatprep.subr.mxu0 0.0
    %1705 = vmatpush1.msra.mxu0 0.0
    %1706 = vmatprep.subr.mxu0 0.0
    %1707 = vmatpush1.msra.mxu0 0.0
    %1708 = vmatprep.subr.mxu0 0.0
    %1709 = vmatpush1.msra.mxu0 0.0
    %1710 = vmatprep.subr.mxu0 0.0
    %1711 = vmatpush1.msra.mxu0 %v57
    %1712 = vmatprep.subr.mxu0 0.0
    %1713 = vmatpush1.msra.mxu0 %v56
    %1714 = vmatprep.subr.mxu0 0.0
    %1715 = vmatpush1.msra.mxu0 %v55
    %1716 = vmatprep.subr.mxu0 0.0
    %1717 = vmatpush1.msra.mxu0 %v54
    %1718 = vmatprep.subr.mxu0 0.0
    %1719 = vmatpush2.msra.mxu0 0.0
    %1720 = vmatprep.subr.mxu0 0.0
    %1721 = vmatpush2.msra.mxu0 0.0
    %1722 = vmatprep.subr.mxu0 0.0
    %1723 = vmatpush2.msra.mxu0 0.0
    %1724 = vmatprep.subr.mxu0 0.0
    %1725 = vmatpush2.msra.mxu0 0.0
    %1726 = vmatprep.subr.mxu0 0.0
    %1727 = vmatpush2.msra.mxu0 0.0
    %1728 = vmatprep.subr.mxu0 0.0
    %1729 = vmatpush2.msra.mxu0 0.0
    %1730 = vmatprep.subr.mxu0 0.0
    %1731 = vmatpush2.msra.mxu0 0.0
    %1732 = vmatprep.subr.mxu0 0.0
    %1733 = vmatpush2.msra.mxu0 0.0
    %1734 = vmatprep.subr.mxu0 0.0
    %1735 = vmatpush2.msra.mxu0 0.0
    %1736 = vmatprep.subr.mxu0 0.0
    %1737 = vmatpush2.msra.mxu0 0.0
    %1738 = vmatprep.subr.mxu0 0.0
    %1739 = vmatpush2.msra.mxu0 0.0
    %1740 = vmatprep.subr.mxu0 0.0
    %1741 = vmatpush2.msra.mxu0 0.0
    %1742 = vmatprep.subr.mxu0 0.0
    %1743 = vmatpush2.msra.mxu0 0.0
    %1744 = vmatprep.subr.mxu0 0.0
    %1745 = vmatpush2.msra.mxu0 0.0
    %1746 = vmatprep.subr.mxu0 0.0
    %1747 = vmatpush2.msra.mxu0 0.0
    %1748 = vmatprep.subr.mxu0 0.0
    %1749 = vmatpush2.msra.mxu0 0.0
    %1750 = vmatprep.mubr.f32.mxu0 0.0
    %1751 = vmatmul.mubr.f32.gmra.mxu0 %v1684
    %v1752 = vpop.f32.mrf.mxu0
    %v1753 = vadd.f32 %v1680, %v1752
    %v1754 = vpop.f32.mrf.mxu0
    %1755 = vdwg.mxu0
    %v1756 = vadd.f32 %v1753, %v424
    %v1757 = vtanh.pop %v1756
    %s1758 = scalar_lea.vmem [#allocation2], 48
    %1759 = vst.msk [vmem:[%s1758] sm:$0xff] %vm202, %v1757
    %1760 = vmatprep.subr.mxu0 0.0
    %1761 = vmatpush1.msra.mxu0 0.0
    %1762 = vmatprep.subr.mxu0 0.0
    %1763 = vmatpush1.msra.mxu0 0.0
    %1764 = vmatprep.subr.mxu0 0.0
    %1765 = vmatpush1.msra.mxu0 0.0
    %1766 = vmatprep.subr.mxu0 0.0
    %1767 = vmatpush1.msra.mxu0 0.0
    %1768 = vmatprep.subr.mxu0 0.0
    %1769 = vmatpush1.msra.mxu0 0.0
    %1770 = vmatprep.subr.mxu0 0.0
    %1771 = vmatpush1.msra.mxu0 0.0
    %1772 = vmatprep.subr.mxu0 0.0
    %1773 = vmatpush1.msra.mxu0 0.0
    %1774 = vmatprep.subr.mxu0 0.0
    %1775 = vmatpush1.msra.mxu0 0.0
    %1776 = vmatprep.subr.mxu0 0.0
    %1777 = vmatpush1.msra.mxu0 0.0
    %1778 = vmatprep.subr.mxu0 0.0
    %1779 = vmatpush1.msra.mxu0 0.0
    %1780 = vmatprep.subr.mxu0 0.0
    %1781 = vmatpush1.msra.mxu0 0.0
    %1782 = vmatprep.subr.mxu0 0.0
    %1783 = vmatpush1.msra.mxu0 0.0
    %1784 = vmatprep.subr.mxu0 0.0
    %1785 = vmatpush1.msra.mxu0 %v48
    %1786 = vmatprep.subr.mxu0 0.0
    %1787 = vmatpush1.msra.mxu0 %v47
    %1788 = vmatprep.subr.mxu0 0.0
    %1789 = vmatpush1.msra.mxu0 %v46
    %1790 = vmatprep.subr.mxu0 0.0
    %1791 = vmatpush1.msra.mxu0 %v45
    %1792 = vmatprep.subr.mxu0 0.0
    %1793 = vmatpush2.msra.mxu0 0.0
    %1794 = vmatprep.subr.mxu0 0.0
    %1795 = vmatpush2.msra.mxu0 0.0
    %1796 = vmatprep.subr.mxu0 0.0
    %1797 = vmatpush2.msra.mxu0 0.0
    %1798 = vmatprep.subr.mxu0 0.0
    %1799 = vmatpush2.msra.mxu0 0.0
    %1800 = vmatprep.subr.mxu0 0.0
    %1801 = vmatpush2.msra.mxu0 0.0
    %1802 = vmatprep.subr.mxu0 0.0
    %1803 = vmatpush2.msra.mxu0 0.0
    %1804 = vmatprep.subr.mxu0 0.0
    %1805 = vmatpush2.msra.mxu0 0.0
    %1806 = vmatprep.subr.mxu0 0.0
    %1807 = vmatpush2.msra.mxu0 0.0
    %1808 = vmatprep.subr.mxu0 0.0
    %1809 = vmatpush2.msra.mxu0 0.0
    %1810 = vmatprep.subr.mxu0 0.0
    %1811 = vmatpush2.msra.mxu0 0.0
    %1812 = vmatprep.subr.mxu0 0.0
    %1813 = vmatpush2.msra.mxu0 0.0
    %1814 = vmatprep.subr.mxu0 0.0
    %1815 = vmatpush2.msra.mxu0 0.0
    %1816 = vmatprep.subr.mxu0 0.0
    %1817 = vmatpush2.msra.mxu0 0.0
    %1818 = vmatprep.subr.mxu0 0.0
    %1819 = vmatpush2.msra.mxu0 0.0
    %1820 = vmatprep.subr.mxu0 0.0
    %1821 = vmatpush2.msra.mxu0 0.0
    %1822 = vmatprep.subr.mxu0 0.0
    %1823 = vmatpush2.msra.mxu0 0.0
    %1824 = vmatprep.mubr.f32.mxu0 0.0
    %1825 = vmatmul.mubr.f32.gmra.mxu0 %v1684
    %v1826 = vpop.f32.mrf.mxu0
    %v1827 = vadd.f32 0.0, %v1826
    %v1828 = vpop.f32.mrf.mxu0
    %1829 = vdwg.mxu0
    %v1830 = vadd.f32 %v199, %v1827
    %v1831 = vtanh.pop %v1830
    %v1833 = vsel %vm202, %v1757, 0
    %1835 = vmatprep.subr.mxu0 0.0
    %1836 = vmatpush1.msra.mxu0 0.0
    %1837 = vmatprep.subr.mxu0 0.0
    %1838 = vmatpush1.msra.mxu0 0.0
    %1839 = vmatprep.subr.mxu0 0.0
    %1840 = vmatpush1.msra.mxu0 0.0
    %1841 = vmatprep.subr.mxu0 0.0
    %1842 = vmatpush1.msra.mxu0 0.0
    %1843 = vmatprep.subr.mxu0 0.0
    %1844 = vmatpush1.msra.mxu0 0.0
    %1845 = vmatprep.subr.mxu0 0.0
    %1846 = vmatpush1.msra.mxu0 0.0
    %1847 = vmatprep.subr.mxu0 0.0
    %1848 = vmatpush1.msra.mxu0 0.0
    %1849 = vmatprep.subr.mxu0 0.0
    %1850 = vmatpush1.msra.mxu0 0.0
    %1851 = vmatprep.subr.mxu0 0.0
    %1852 = vmatpush1.msra.mxu0 0.0
    %1853 = vmatprep.subr.mxu0 0.0
    %1854 = vmatpush1.msra.mxu0 0.0
    %1855 = vmatprep.subr.mxu0 0.0
    %1856 = vmatpush1.msra.mxu0 0.0
    %1857 = vmatprep.subr.mxu0 0.0
    %1858 = vmatpush1.msra.mxu0 0.0
    %1859 = vmatprep.subr.mxu0 0.0
    %1860 = vmatpush1.msra.mxu0 %v53
    %1861 = vmatprep.subr.mxu0 0.0
    %1862 = vmatpush1.msra.mxu0 %v52
    %1863 = vmatprep.subr.mxu0 0.0
    %1864 = vmatpush1.msra.mxu0 %v51
    %1865 = vmatprep.subr.mxu0 0.0
    %1866 = vmatpush1.msra.mxu0 %v50
    %1867 = vmatprep.subr.mxu0 0.0
    %1868 = vmatpush2.msra.mxu0 0.0
    %1869 = vmatprep.subr.mxu0 0.0
    %1870 = vmatpush2.msra.mxu0 0.0
    %1871 = vmatprep.subr.mxu0 0.0
    %1872 = vmatpush2.msra.mxu0 0.0
    %1873 = vmatprep.subr.mxu0 0.0
    %1874 = vmatpush2.msra.mxu0 0.0
    %1875 = vmatprep.subr.mxu0 0.0
    %1876 = vmatpush2.msra.mxu0 0.0
    %1877 = vmatprep.subr.mxu0 0.0
    %1878 = vmatpush2.msra.mxu0 0.0
    %1879 = vmatprep.subr.mxu0 0.0
    %1880 = vmatpush2.msra.mxu0 0.0
    %1881 = vmatprep.subr.mxu0 0.0
    %1882 = vmatpush2.msra.mxu0 0.0
    %1883 = vmatprep.subr.mxu0 0.0
    %1884 = vmatpush2.msra.mxu0 0.0
    %1885 = vmatprep.subr.mxu0 0.0
    %1886 = vmatpush2.msra.mxu0 0.0
    %1887 = vmatprep.subr.mxu0 0.0
    %1888 = vmatpush2.msra.mxu0 0.0
    %1889 = vmatprep.subr.mxu0 0.0
    %1890 = vmatpush2.msra.mxu0 0.0
    %1891 = vmatprep.subr.mxu0 0.0
    %1892 = vmatpush2.msra.mxu0 0.0
    %1893 = vmatprep.subr.mxu0 0.0
    %1894 = vmatpush2.msra.mxu0 0.0
    %1895 = vmatprep.subr.mxu0 0.0
    %1896 = vmatpush2.msra.mxu0 0.0
    %1897 = vmatprep.subr.mxu0 0.0
    %1898 = vmatpush2.msra.mxu0 0.0
    %1899 = vmatprep.mubr.f32.mxu0 0.0
    %1900 = vmatmul.mubr.f32.gmra.mxu0 %v1833
    %v1901 = vpop.f32.mrf.mxu0
    %v1902 = vadd.f32 0.0, %v1901
    %v1903 = vpop.f32.mrf.mxu0
    %1904 = vdwg.mxu0
    %v1906 = vsel %vm202, %v1831, 0
    %1908 = vmatprep.subr.mxu0 0.0
    %1909 = vmatpush1.msra.mxu0 0.0
    %1910 = vmatprep.subr.mxu0 0.0
    %1911 = vmatpush1.msra.mxu0 0.0
    %1912 = vmatprep.subr.mxu0 0.0
    %1913 = vmatpush1.msra.mxu0 0.0
    %1914 = vmatprep.subr.mxu0 0.0
    %1915 = vmatpush1.msra.mxu0 0.0
    %1916 = vmatprep.subr.mxu0 0.0
    %1917 = vmatpush1.msra.mxu0 0.0
    %1918 = vmatprep.subr.mxu0 0.0
    %1919 = vmatpush1.msra.mxu0 0.0
    %1920 = vmatprep.subr.mxu0 0.0
    %1921 = vmatpush1.msra.mxu0 0.0
    %1922 = vmatprep.subr.mxu0 0.0
    %1923 = vmatpush1.msra.mxu0 0.0
    %1924 = vmatprep.subr.mxu0 0.0
    %1925 = vmatpush1.msra.mxu0 0.0
    %1926 = vmatprep.subr.mxu0 0.0
    %1927 = vmatpush1.msra.mxu0 0.0
    %1928 = vmatprep.subr.mxu0 0.0
    %1929 = vmatpush1.msra.mxu0 0.0
    %1930 = vmatprep.subr.mxu0 0.0
    %1931 = vmatpush1.msra.mxu0 0.0
    %1932 = vmatprep.subr.mxu0 0.0
    %1933 = vmatpush1.msra.mxu0 %v57
    %1934 = vmatprep.subr.mxu0 0.0
    %1935 = vmatpush1.msra.mxu0 %v56
    %1936 = vmatprep.subr.mxu0 0.0
    %1937 = vmatpush1.msra.mxu0 %v55
    %1938 = vmatprep.subr.mxu0 0.0
    %1939 = vmatpush1.msra.mxu0 %v54
    %1940 = vmatprep.subr.mxu0 0.0
    %1941 = vmatpush2.msra.mxu0 0.0
    %1942 = vmatprep.subr.mxu0 0.0
    %1943 = vmatpush2.msra.mxu0 0.0
    %1944 = vmatprep.subr.mxu0 0.0
    %1945 = vmatpush2.msra.mxu0 0.0
    %1946 = vmatprep.subr.mxu0 0.0
    %1947 = vmatpush2.msra.mxu0 0.0
    %1948 = vmatprep.subr.mxu0 0.0
    %1949 = vmatpush2.msra.mxu0 0.0
    %1950 = vmatprep.subr.mxu0 0.0
    %1951 = vmatpush2.msra.mxu0 0.0
    %1952 = vmatprep.subr.mxu0 0.0
    %1953 = vmatpush2.msra.mxu0 0.0
    %1954 = vmatprep.subr.mxu0 0.0
    %1955 = vmatpush2.msra.mxu0 0.0
    %1956 = vmatprep.subr.mxu0 0.0
    %1957 = vmatpush2.msra.mxu0 0.0
    %1958 = vmatprep.subr.mxu0 0.0
    %1959 = vmatpush2.msra.mxu0 0.0
    %1960 = vmatprep.subr.mxu0 0.0
    %1961 = vmatpush2.msra.mxu0 0.0
    %1962 = vmatprep.subr.mxu0 0.0
    %1963 = vmatpush2.msra.mxu0 0.0
    %1964 = vmatprep.subr.mxu0 0.0
    %1965 = vmatpush2.msra.mxu0 0.0
    %1966 = vmatprep.subr.mxu0 0.0
    %1967 = vmatpush2.msra.mxu0 0.0
    %1968 = vmatprep.subr.mxu0 0.0
    %1969 = vmatpush2.msra.mxu0 0.0
    %1970 = vmatprep.subr.mxu0 0.0
    %1971 = vmatpush2.msra.mxu0 0.0
    %1972 = vmatprep.mubr.f32.mxu0 0.0
    %1973 = vmatmul.mubr.f32.gmra.mxu0 %v1906
    %v1974 = vpop.f32.mrf.mxu0
    %v1975 = vadd.f32 %v1902, %v1974
    %v1976 = vpop.f32.mrf.mxu0
    %1977 = vdwg.mxu0
    %v1978 = vadd.f32 %v1975, %v424
    %v1979 = vtanh.pop %v1978
    %s1980 = scalar_lea.vmem [#allocation2], 56
    %1981 = vst.msk [vmem:[%s1980] sm:$0xff] %vm202, %v1979
    %v1982 = vld [vmem:[%s5] sm:$0x1]
    %v1983 = vld [vmem:[#allocation2] sm:$0xff]
    %v1984 = vld [vmem:[#allocation2 + $0x8] sm:$0xff]
    %v1985 = vld [vmem:[#allocation2 + $0x10] sm:$0xff]
    %v1986 = vld [vmem:[#allocation2 + $0x18] sm:$0xff]
    %v1987 = vld [vmem:[#allocation2 + $0x20] sm:$0xff]
    %v1988 = vld [vmem:[#allocation2 + $0x28] sm:$0xff]
    %v1989 = vld [vmem:[#allocation2 + $0x30] sm:$0xff]
    %v1990 = vld [vmem:[#allocation2 + $0x38] sm:$0xff]
    %v1992 = vlaneseq
    %v1993 = vshrl.u32 %v1992, 7
    %v1994 = vsub.s32 0, %v1993
    %v1995 = vrot.slane %v1982, %v1994
    %v1997 = vmul.f32 %v1983, %v1995
    %v1998 = vmul.f32 %v1984, %v1995
    %v1999 = vmul.f32 %v1985, %v1995
    %v2000 = vmul.f32 %v1986, %v1995
    %v2001 = vmul.f32 %v1987, %v1995
    %v2002 = vmul.f32 %v1988, %v1995
    %v2003 = vmul.f32 %v1989, %v1995
    %v2004 = vmul.f32 %v1990, %v1995
    %v2005 = vsel %vm202, %v1997, 0.0
    %2006 = vadd.xlane.f32.xlu0 %v2005
    %v2007 = vpop.xlane.xlu0 %2006
    %v2008 = vsel %vm202, %v1998, 0.0
    %2009 = vadd.xlane.f32.xlu0 %v2008
    %v2010 = vpop.xlane.xlu0 %2009
    %v2011 = vsel %vm202, %v1999, 0.0
    %2012 = vadd.xlane.f32.xlu0 %v2011
    %v2013 = vpop.xlane.xlu0 %2012
    %v2014 = vsel %vm202, %v2000, 0.0
    %2015 = vadd.xlane.f32.xlu0 %v2014
    %v2016 = vpop.xlane.xlu0 %2015
    %v2017 = vsel %vm202, %v2001, 0.0
    %2018 = vadd.xlane.f32.xlu0 %v2017
    %v2019 = vpop.xlane.xlu0 %2018
    %v2020 = vsel %vm202, %v2002, 0.0
    %2021 = vadd.xlane.f32.xlu0 %v2020
    %v2022 = vpop.xlane.xlu0 %2021
    %v2023 = vsel %vm202, %v2003, 0.0
    %2024 = vadd.xlane.f32.xlu0 %v2023
    %v2025 = vpop.xlane.xlu0 %2024
    %v2026 = vsel %vm202, %v2004, 0.0
    %2027 = vadd.xlane.f32.xlu0 %v2026
    %v2028 = vpop.xlane.xlu0 %2027
    %v2029 = vld [vmem:[#allocation3] sm:$0x1]
    %v2031 = vlaneseq
    %v2032 = vshrl.u32 %v2031, 7
    %v2033 = vsub.s32 0, %v2032
    %v2034 = vrot.slane %v2029, %v2033
    %2035 = vset.pattern.permute.xlu0 0
    %2036 = vperm.xlu0 %2035, %v2034
    %v2037 = vpop.permute.xlu0 %2036
    %v2039 = vadd.f32 %v2007, %v2037
    %v2040 = vadd.f32 %v2010, %v2037
    %v2041 = vadd.f32 %v2013, %v2037
    %v2042 = vadd.f32 %v2016, %v2037
    %v2043 = vadd.f32 %v2019, %v2037
    %v2044 = vadd.f32 %v2022, %v2037
    %v2045 = vadd.f32 %v2025, %v2037
    %v2046 = vadd.f32 %v2028, %v2037
    %v2055 = vlaneseq
    %v2056 = vand.u32 %v2055, 127
    %v2057 = vlaneseq
    %v2058 = vshrl.u32 %v2057, 7
    %v2059 = vsub.s32 %v2056, %v2058
    %v2060 = vrot.slane %v2039, %v2059
    %v2061 = vlaneseq
    %v2062 = vshrl.u32 %v2061, 7
    %v2063 = vsub.s32 %v2056, %v2062
    %v2064 = vrot.slane %v2040, %v2063
    %v2065 = vlaneseq
    %v2066 = vshrl.u32 %v2065, 7
    %v2067 = vsub.s32 %v2056, %v2066
    %v2068 = vrot.slane %v2041, %v2067
    %v2069 = vlaneseq
    %v2070 = vshrl.u32 %v2069, 7
    %v2071 = vsub.s32 %v2056, %v2070
    %v2072 = vrot.slane %v2042, %v2071
    %v2073 = vlaneseq
    %v2074 = vshrl.u32 %v2073, 7
    %v2075 = vsub.s32 %v2056, %v2074
    %v2076 = vrot.slane %v2043, %v2075
    %v2077 = vlaneseq
    %v2078 = vshrl.u32 %v2077, 7
    %v2079 = vsub.s32 %v2056, %v2078
    %v2080 = vrot.slane %v2044, %v2079
    %v2081 = vlaneseq
    %v2082 = vshrl.u32 %v2081, 7
    %v2083 = vsub.s32 %v2056, %v2082
    %v2084 = vrot.slane %v2045, %v2083
    %v2085 = vlaneseq
    %v2086 = vshrl.u32 %v2085, 7
    %v2087 = vsub.s32 %v2056, %v2086
    %v2088 = vrot.slane %v2046, %v2087
    %vm2089 = vcmask 1041409
    %v2090 = vsel %vm2089, %v2064, %v2060
    %vm2091 = vcmask 1042434
    %v2092 = vsel %vm2091, %v2068, %v2090
    %vm2093 = vcmask 1043459
    %v2094 = vsel %vm2093, %v2072, %v2092
    %vm2095 = vcmask 1044484
    %v2096 = vsel %vm2095, %v2076, %v2094
    %vm2097 = vcmask 1045509
    %v2098 = vsel %vm2097, %v2080, %v2096
    %vm2099 = vcmask 1046534
    %v2100 = vsel %vm2099, %v2084, %v2098
    %vm2101 = vcmask 1047559
    %v2102 = vsel %vm2101, %v2088, %v2100
    %vm2104 = vcmask 64512
    %2105 = vst.msk [vmem:[#allocation7] sm:$0xff] %vm2104, %v2102
    // Predicated region
    $region34: #{tpu_custom_call.1} parent=1 // pred_check
      _
    $region35: #{tpu_custom_call.1} parent=1 // pred_check_branch
      %2107 = sbr.rel (0) target = $region37
    $region36: #{tpu_custom_call.1} parent=1 // pred_region
      %s2109 = ssub.s32 128, 128
      %2110 = vsyncadd [#allocation6], %s2109
      %s2112 = sshll.u32 [#allocation7], 4
      %s2113 = int_to_ptr.vmem [resolvable:$true] %s2112
      %2115 = dma.vmem_to_hbm [thread:$0]  %s2113, 128, %s7, [#allocation6]
    $region37: #{tpu_custom_call.1} parent=1 // pred_fallthru
      _
    // Predicated region
    $region38: #{tpu_custom_call.1} parent=1 // pred_check
      _
    $region39: #{tpu_custom_call.1} parent=1 // pred_check_branch
      %2117 = sbr.rel (0) target = $region41
    $region40: #{tpu_custom_call.1} parent=1 // pred_region
      %2118 = dma.done [#allocation6], 128
    $region41: #{tpu_custom_call.1} parent=1 // pred_fallthru
      _
    %2119 = vsyncpa [#allocation5], 1
    %2120 = vsyncpa [#allocation6], 1

</llo_original>
